<compile_context>
chip_gen: v5e
topology: v5e:2x2
jax: 0.10.0
libtpu: 0.0.40
codegen_flags: <defaults>
</compile_context>

<pallas_src>
import functools
import math

import jax
import jax.numpy as jnp
from jax.experimental import pallas as pl
from jax.experimental.pallas import tpu as pltpu


def _round_up(x, m):
    return ((x + m - 1) // m) * m


def _pick_tile(dim_pad, cap, align=128):
    """Largest multiple of `align` that is <= cap and divides dim_pad exactly."""
    best = align
    t = align
    limit = min(cap, dim_pad)
    while t <= limit:
        if dim_pad % t == 0:
            best = t
        t += align
    return best


def _lora_conv_gemm_kernel(x_ref, wt_ref, b_ref, at_ref, bt_ref, o_ref,
                           acc_ref, ax_ref, *, scaling):
    """Fused base GEMM + LoRA GEMM over a (M, N, K) grid.

    Grid axes: i -> M tiles (parallel), j -> N tiles (arbitrary),
               k -> K tiles (reduction, innermost, arbitrary).
    acc_ref: (tm, tn)    f32 accumulator for the base path (reset per (i, j)).
    ax_ref : (tm, r_pad) f32 accumulator for P @ A^T; computed only at j == 0
             and reused (persistent scratch) for every other j tile of the
             same i tile.
    """
    j = pl.program_id(1)
    k = pl.program_id(2)

    @pl.when(k == 0)
    def _init_acc():
        acc_ref[...] = jnp.zeros_like(acc_ref)

    x = x_ref[...]

    # Base path partial product: (tm, tk) @ (tk, tn) on the MXU, f32 accumulation.
    acc_ref[...] += jnp.dot(x, wt_ref[...], preferred_element_type=jnp.float32)

    # LoRA down-projection: independent of j -> compute once per (i, k) only.
    @pl.when(j == 0)
    def _lora_down():
        @pl.when(k == 0)
        def _init_ax():
            ax_ref[...] = jnp.zeros_like(ax_ref)

        tk = x_ref.shape[1]
        ks = pl.multiple_of(k * tk, tk)          # A^T is fully resident; slice the K tile.
        ax_ref[...] += jnp.dot(x, at_ref[pl.ds(ks, tk), :],
                               preferred_element_type=jnp.float32)

    @pl.when(k == pl.num_programs(2) - 1)
    def _finalize():
        # Up-projection kept entirely in f32 (tiny matmul, only at finalize);
        # scaling applied to the small (tm, r_pad) intermediate.
        lora = jnp.dot(ax_ref[...] * scaling, bt_ref[...],
                       preferred_element_type=jnp.float32)
        o_ref[...] = (acc_ref[...] + b_ref[...] + lora).astype(o_ref.dtype)


def _im2col(x, kh, kw, stride, padding):
    """x: (B, Cin, H, W) NCHW -> patches (B*Ho*Wo, Cin*kh*kw).

    Feature ordering matches PyTorch's W.reshape(Cout, Cin*kh*kw):
    column index = ci * (kh*kw) + i * kw + j  (cross-correlation, no flip).
    """
    B, C, H, W = x.shape
    sh, sw = stride
    ph, pw = padding
    Ho = (H + 2 * ph - kh) // sh + 1
    Wo = (W + 2 * pw - kw) // sw + 1
    xp = jnp.pad(x, ((0, 0), (0, 0), (ph, ph), (pw, pw)))
    cols = []
    for i in range(kh):
        for j in range(kw):
            cols.append(xp[:, :, i:i + sh * Ho:sh, j:j + sw * Wo:sw])  # (B, C, Ho, Wo)
    p = jnp.stack(cols, axis=2)                       # (B, C, kh*kw, Ho, Wo)
    p = p.transpose(0, 3, 4, 1, 2)                    # (B, Ho, Wo, C, kh*kw)
    return p.reshape(B * Ho * Wo, C * kh * kw), Ho, Wo
    # TODO(synk): move patch extraction into the kernel (BlockSpec windows over x)
    # to avoid materializing the kh*kw-inflated P matrix in HBM.


def lora_conv2d_forward(x, W, bias, A, B_w, scaling, *,
                        stride=(1, 1), padding=(0, 0),
                        compute_dtype=jnp.bfloat16):
    """LoRA Conv2d forward.

    x: (B, Cin, H, W) NCHW; W: (Cout, Cin, kh, kw); bias: (Cout,) or None;
    A: (r, Cin, kh, kw) [lora_A conv weight]; B_w: (Cout, r, 1, 1) [lora_B 1x1 conv].
    Returns (B, Cout, Ho, Wo) in x.dtype.
    compute_dtype: matmul input dtype (default bf16 for 2x MXU throughput and
    half the HBM/DMA traffic; accumulation is always f32).  Pass None or
    jnp.float32 for full f32 compute.
    """
    Bsz, Cin, H, Wd = x.shape
    Cout, _, kh, kw = W.shape
    r = A.shape[0]
    out_dtype = x.dtype  # module casts result back to previous_dtype

    P, Ho, Wo = _im2col(x, kh, kw, stride, padding)   # (M, K)
    M, K = P.shape
    N = Cout

    if bias is None:
        bias = jnp.zeros((Cout,), dtype=jnp.float32)

    Wt = W.reshape(Cout, K).T                          # (K, N)
    At = A.reshape(r, K).T                             # (K, r)
    Bt = B_w.reshape(Cout, r).T                        # (r, N)
    b2 = bias.reshape(1, N).astype(jnp.float32)        # added on the f32 accumulator

    if compute_dtype is not None:
        P = P.astype(compute_dtype)
        Wt = Wt.astype(compute_dtype)
        At = At.astype(compute_dtype)
    Bt = Bt.astype(jnp.float32)                        # up-projection stays f32

    csize = jnp.dtype(P.dtype).itemsize
    sub = 16 if csize == 2 else 8                      # bf16 packs 16 rows / sublane group

    # Tile selection: pad K/N only to multiples of 128; tiles divide the padded
    # dims exactly (no tk/tn-granularity padding waste).  tm up to 512; lane
    # dims are multiples of 128 (lane-dense output, MXU aligned on every gen).
    K_pad = _round_up(K, 128)
    N_pad = _round_up(N, 128)
    tk = _pick_tile(K_pad, 512)
    tn = _pick_tile(N_pad, 1024)                       # Cout <= 1024 -> P streamed once
    if M >= 1024:
        tm = 512
    elif M >= 512:
        tm = 256                                       # keeps >= 2 M tiles for megacore
    else:
        tm = _round_up(M, sub)
    M_pad = _round_up(M, tm)
    r_pad = _round_up(max(r, 1), 128)                  # lane-dense LoRA operands

    # Zero-padding keeps the math exact: extra K columns / r lanes contribute 0,
    # extra M rows / N columns are sliced off below.
    P = jnp.pad(P, ((0, M_pad - M), (0, K_pad - K)))
    Wt = jnp.pad(Wt, ((0, K_pad - K), (0, N_pad - N)))
    At = jnp.pad(At, ((0, K_pad - K), (0, r_pad - r)))
    Bt = jnp.pad(Bt, ((0, r_pad - r), (0, N_pad - N)))
    b2 = jnp.pad(b2, ((0, 0), (0, N_pad - N)))

    grid = (M_pad // tm, N_pad // tn, K_pad // tk)
    kernel = functools.partial(_lora_conv_gemm_kernel, scaling=float(scaling))

    out2 = pl.pallas_call(
        kernel,
        out_shape=jax.ShapeDtypeStruct((M_pad, N_pad), out_dtype),
        grid_spec=pltpu.PrefetchScalarGridSpec(
            num_scalar_prefetch=0,
            grid=grid,
            in_specs=[
                pl.BlockSpec((tm, tk), lambda i, j, k: (i, k)),        # im2col patches
                pl.BlockSpec((tk, tn), lambda i, j, k: (k, j)),        # base W^T tile
                pl.BlockSpec((1, tn), lambda i, j, k: (0, j)),         # bias row (f32)
                pl.BlockSpec((K_pad, r_pad), lambda i, j, k: (0, 0)),  # lora_A^T, VMEM-resident
                pl.BlockSpec((r_pad, tn), lambda i, j, k: (0, j)),     # lora_B^T (f32)
            ],
            out_specs=pl.BlockSpec((tm, tn), lambda i, j, k: (i, j)),
            scratch_shapes=[
                pltpu.VMEM((tm, tn), jnp.float32),     # base accumulator
                pltpu.VMEM((tm, r_pad), jnp.float32),  # P @ A^T accumulator (reused across j)
            ],
        ),
        compiler_params=pltpu.CompilerParams(
            # j must stay in-order on one core (ax scratch carried across j);
            # i is parallel so the M tiles shard across TensorCores (v7x megacore).
            dimension_semantics=("parallel", "arbitrary", "arbitrary"),
            vmem_limit_bytes=48 * 1024 * 1024,
        ),
    )(P, Wt, b2, At, Bt)

    out = out2[:M, :N].reshape(Bsz, Ho, Wo, Cout).transpose(0, 3, 1, 2)
    return out.astype(out_dtype)


if __name__ == "__main__":
    # Module hyper-parameters (consistent with Conv2d.__init__ / update_layer):
    # base nn.Conv2d(Cin=4, Cout=16, kernel_size=3, stride=1, padding=1, bias=True)
    batch, cin, hw = 2, 4, 16
    cout = 16
    kh = kw = 3
    stride = (1, 1)
    padding = (1, 1)
    r, lora_alpha = 8, 16
    scaling = lora_alpha / r          # use_rslora=False -> alpha / r
    # lora_dropout = 0.0 -> nn.Identity in forward (no-op)

    key = jax.random.PRNGKey(0)
    kx, kw_, kb, ka, kbw = jax.random.split(key, 5)

    fan_in = cin * kh * kw
    bound = 1.0 / math.sqrt(fan_in)
    W = jax.random.uniform(kw_, (cout, cin, kh, kw),
                           minval=-bound, maxval=bound, dtype=jnp.float32)
    bias = jax.random.uniform(kb, (cout,),
                              minval=-bound, maxval=bound, dtype=jnp.float32)

    # LoRA adapter conv weights. Default PEFT init zeros lora_B; use small
    # random values so the LoRA path is exercised non-trivially.
    A = jax.random.uniform(ka, (r, cin, kh, kw),
                           minval=-bound, maxval=bound, dtype=jnp.float32)
    B_w = 0.02 * jax.random.normal(kbw, (cout, r, 1, 1), dtype=jnp.float32)

    x = jax.random.normal(kx, (batch, cin, hw, hw), dtype=jnp.float32)

    # Pure-JAX reference (XLA convs at highest precision).
    dn = ("NCHW", "OIHW", "NCHW")
    pad = [(padding[0], padding[0]), (padding[1], padding[1])]
    base = jax.lax.conv_general_dilated(
        x, W, window_strides=stride, padding=pad, dimension_numbers=dn,
        precision=jax.lax.Precision.HIGHEST) + bias[None, :, None, None]
    a_out = jax.lax.conv_general_dilated(
        x, A, window_strides=stride, padding=pad, dimension_numbers=dn,
        precision=jax.lax.Precision.HIGHEST)
    lora = jax.lax.conv_general_dilated(
        a_out, B_w, window_strides=(1, 1), padding=[(0, 0), (0, 0)],
        dimension_numbers=dn, precision=jax.lax.Precision.HIGHEST)
    ref = base + lora * scaling

    # f32 compute path: tight correctness check.
    out_f32 = lora_conv2d_forward(x, W, bias, A, B_w, scaling,
                                  stride=stride, padding=padding,
                                  compute_dtype=jnp.float32)
    out_f32 = jax.block_until_ready(out_f32)
    assert out_f32.shape == ref.shape == (batch, cout, hw, hw)
    assert jnp.allclose(out_f32, ref, atol=1e-4, rtol=1e-4), "f32 mismatch vs reference"

    # Default bf16 compute path (f32 accumulation): looser tolerance.
    out_bf16 = lora_conv2d_forward(x, W, bias, A, B_w, scaling,
                                   stride=stride, padding=padding)
    out_bf16 = jax.block_until_ready(out_bf16)
    assert out_bf16.shape == ref.shape
    assert jnp.allclose(out_bf16, ref, atol=3e-2, rtol=3e-2), "bf16 mismatch vs reference"

    # TODO(synk): merge()/unmerge()/get_delta_weight() (weight mutation), multi-adapter
    # accumulation and lora_dropout > 0 (stateful PRNG) are not part of this inference kernel.
    print("KERNEL_OK")
</pallas_src>

<mosaic_0001>
module attributes {stable_mosaic.version = 11 : i64} {
  func.func @_lora_conv_gemm_kernel(%arg0: i32, %arg1: i32, %arg2: i32, %arg3: memref<256x128xf32, #tpu.memory_space<vmem>>, %arg4: memref<128x128xf32, #tpu.memory_space<vmem>>, %arg5: memref<1x128xf32, #tpu.memory_space<vmem>>, %arg6: memref<128x128xf32, #tpu.memory_space<vmem>>, %arg7: memref<128x128xf32, #tpu.memory_space<vmem>>, %arg8: memref<256x128xf32, #tpu.memory_space<vmem>>, %arg9: memref<256x128xf32, #tpu.memory_space<vmem>>, %arg10: memref<256x128xf32, #tpu.memory_space<vmem>>) attributes {dimension_semantics = [#tpu.dimension_semantics<parallel>, #tpu.dimension_semantics<arbitrary>, #tpu.dimension_semantics<arbitrary>], iteration_bounds = array<i64: 2, 1, 1>, scalar_prefetch = 0 : i64, scratch_operands = 2 : i64, tpu.core_type = #tpu.core_type<tc>, window_params = [{transform_indices = @transform_0, window_bounds = array<i64: 256, 128>}, {transform_indices = @transform_1, window_bounds = array<i64: 128, 128>}, {transform_indices = @transform_2, window_bounds = array<i64: 1, 128>}, {pipeline_mode = #tpu.pipeline_mode<synchronous>, transform_indices = @transform_3, window_bounds = array<i64: 128, 128>}, {transform_indices = @transform_4, window_bounds = array<i64: 128, 128>}, {transform_indices = @transform_5, window_bounds = array<i64: 256, 128>}]} {
    %c0_i32 = arith.constant 0 : i32
    %0 = arith.cmpi eq, %arg2, %c0_i32 : i32
    %1 = arith.extui %0 : i1 to i32
    %c0_i32_0 = arith.constant 0 : i32
    %2 = arith.cmpi ne, %1, %c0_i32_0 : i32
    scf.if %2 {
      %cst_12 = arith.constant 0.000000e+00 : f32
      %15 = vector.broadcast %cst_12 : f32 to vector<256x128xf32>
      %c0_13 = arith.constant 0 : index
      %c0_14 = arith.constant 0 : index
      %16 = vector.load %arg9[%c0_13, %c0_14] : memref<256x128xf32, #tpu.memory_space<vmem>>, vector<256x128xf32>
      tpu.vector_store %arg9[%c0_13, %c0_14], %15 {strides = array<i32>} : memref<256x128xf32, #tpu.memory_space<vmem>>, vector<256x128xf32>,
    } else {
    }
    %c0 = arith.constant 0 : index
    %c0_1 = arith.constant 0 : index
    %3 = vector.load %arg3[%c0, %c0_1] : memref<256x128xf32, #tpu.memory_space<vmem>>, vector<256x128xf32>
    %c0_2 = arith.constant 0 : index
    %c0_3 = arith.constant 0 : index
    %4 = vector.load %arg9[%c0_2, %c0_3] : memref<256x128xf32, #tpu.memory_space<vmem>>, vector<256x128xf32>
    %c0_4 = arith.constant 0 : index
    %c0_5 = arith.constant 0 : index
    %5 = vector.load %arg4[%c0_4, %c0_5] : memref<128x128xf32, #tpu.memory_space<vmem>>, vector<128x128xf32>
    %cst = arith.constant dense<0.000000e+00> : vector<256x128xf32>
    %6 = tpu.matmul %3, %5, %cst {dimension_numbers = #tpu.dot_dimension_numbers<[1], [0], [0], [1], [0, 0, 1, 1], [], []>} : vector<256x128xf32>, vector<128x128xf32>, vector<256x128xf32> -> vector<256x128xf32>
    %7 = arith.addf %4, %6 : vector<256x128xf32>
    %c0_6 = arith.constant 0 : index
    %c0_7 = arith.constant 0 : index
    %8 = vector.load %arg9[%c0_6, %c0_7] : memref<256x128xf32, #tpu.memory_space<vmem>>, vector<256x128xf32>
    tpu.vector_store %arg9[%c0_6, %c0_7], %7 {strides = array<i32>} : memref<256x128xf32, #tpu.memory_space<vmem>>, vector<256x128xf32>,
    %c0_i32_8 = arith.constant 0 : i32
    %9 = arith.cmpi eq, %arg1, %c0_i32_8 : i32
    %10 = arith.extui %9 : i1 to i32
    %c0_i32_9 = arith.constant 0 : i32
    %11 = arith.cmpi ne, %10, %c0_i32_9 : i32
    scf.if %11 {
      %c0_i32_12 = arith.constant 0 : i32
      %15 = arith.cmpi eq, %arg2, %c0_i32_12 : i32
      %16 = arith.extui %15 : i1 to i32
      %c0_i32_13 = arith.constant 0 : i32
      %17 = arith.cmpi ne, %16, %c0_i32_13 : i32
      scf.if %17 {
        %cst_20 = arith.constant 0.000000e+00 : f32
        %26 = vector.broadcast %cst_20 : f32 to vector<256x128xf32>
        %c0_21 = arith.constant 0 : index
        %c0_22 = arith.constant 0 : index
        %27 = vector.load %arg10[%c0_21, %c0_22] : memref<256x128xf32, #tpu.memory_space<vmem>>, vector<256x128xf32>
        tpu.vector_store %arg10[%c0_21, %c0_22], %26 {strides = array<i32>} : memref<256x128xf32, #tpu.memory_space<vmem>>, vector<256x128xf32>,
      } else {
      }
      %c128_i32 = arith.constant 128 : i32
      %18 = arith.muli %arg2, %c128_i32 : i32
      %19 = tpu.assume_multiple %18, 128 : i32
      %c0_14 = arith.constant 0 : index
      %c0_15 = arith.constant 0 : index
      %20 = vector.load %arg10[%c0_14, %c0_15] : memref<256x128xf32, #tpu.memory_space<vmem>>, vector<256x128xf32>
      %21 = arith.index_cast %19 : i32 to index
      %c0_16 = arith.constant 0 : index
      %22 = vector.load %arg6[%21, %c0_16] : memref<128x128xf32, #tpu.memory_space<vmem>>, vector<128x128xf32>
      %cst_17 = arith.constant dense<0.000000e+00> : vector<256x128xf32>
      %23 = tpu.matmul %3, %22, %cst_17 {dimension_numbers = #tpu.dot_dimension_numbers<[1], [0], [0], [1], [0, 0, 1, 1], [], []>} : vector<256x128xf32>, vector<128x128xf32>, vector<256x128xf32> -> vector<256x128xf32>
      %24 = arith.addf %20, %23 : vector<256x128xf32>
      %c0_18 = arith.constant 0 : index
      %c0_19 = arith.constant 0 : index
      %25 = vector.load %arg10[%c0_18, %c0_19] : memref<256x128xf32, #tpu.memory_space<vmem>>, vector<256x128xf32>
      tpu.vector_store %arg10[%c0_18, %c0_19], %24 {strides = array<i32>} : memref<256x128xf32, #tpu.memory_space<vmem>>, vector<256x128xf32>,
    } else {
    }
    %c0_i32_10 = arith.constant 0 : i32
    %12 = arith.cmpi eq, %arg2, %c0_i32_10 : i32
    %13 = arith.extui %12 : i1 to i32
    %c0_i32_11 = arith.constant 0 : i32
    %14 = arith.cmpi ne, %13, %c0_i32_11 : i32
    scf.if %14 {
      %c0_12 = arith.constant 0 : index
      %c0_13 = arith.constant 0 : index
      %15 = vector.load %arg10[%c0_12, %c0_13] : memref<256x128xf32, #tpu.memory_space<vmem>>, vector<256x128xf32>
      %cst_14 = arith.constant 2.000000e+00 : f32
      %16 = vector.broadcast %cst_14 : f32 to vector<256x128xf32>
      %17 = arith.mulf %15, %16 : vector<256x128xf32>
      %c0_15 = arith.constant 0 : index
      %c0_16 = arith.constant 0 : index
      %18 = vector.load %arg7[%c0_15, %c0_16] : memref<128x128xf32, #tpu.memory_space<vmem>>, vector<128x128xf32>
      %cst_17 = arith.constant dense<0.000000e+00> : vector<256x128xf32>
      %19 = tpu.matmul %17, %18, %cst_17 {dimension_numbers = #tpu.dot_dimension_numbers<[1], [0], [0], [1], [0, 0, 1, 1], [], []>} : vector<256x128xf32>, vector<128x128xf32>, vector<256x128xf32> -> vector<256x128xf32>
      %c0_18 = arith.constant 0 : index
      %c0_19 = arith.constant 0 : index
      %20 = vector.load %arg9[%c0_18, %c0_19] : memref<256x128xf32, #tpu.memory_space<vmem>>, vector<256x128xf32>
      %c0_20 = arith.constant 0 : index
      %c0_21 = arith.constant 0 : index
      %21 = vector.load %arg5[%c0_20, %c0_21] : memref<1x128xf32, #tpu.memory_space<vmem>>, vector<1x128xf32>
      %22 = vector.broadcast %21 : vector<1x128xf32> to vector<256x128xf32>
      %23 = arith.addf %20, %22 : vector<256x128xf32>
      %24 = arith.addf %23, %19 : vector<256x128xf32>
      %c0_22 = arith.constant 0 : index
      %c0_23 = arith.constant 0 : index
      %25 = vector.load %arg8[%c0_22, %c0_23] : memref<256x128xf32, #tpu.memory_space<vmem>>, vector<256x128xf32>
      tpu.vector_store %arg8[%c0_22, %c0_23], %24 {strides = array<i32>} : memref<256x128xf32, #tpu.memory_space<vmem>>, vector<256x128xf32>,
    } else {
    }
    return
  }
  func.func @transform_0(%arg0: i32, %arg1: i32, %arg2: i32) -> (i32, i32) {
    %c0_i32 = arith.constant 0 : i32
    return %arg0, %arg2 : i32, i32
  }
  func.func @transform_1(%arg0: i32, %arg1: i32, %arg2: i32) -> (i32, i32) {
    %c0_i32 = arith.constant 0 : i32
    return %arg2, %arg1 : i32, i32
  }
  func.func @transform_2(%arg0: i32, %arg1: i32, %arg2: i32) -> (i32, i32) {
    %c0_i32 = arith.constant 0 : i32
    %c0_i32_0 = arith.constant 0 : i32
    return %c0_i32, %arg1 : i32, i32
  }
  func.func @transform_3(%arg0: i32, %arg1: i32, %arg2: i32) -> (i32, i32) {
    %c0_i32 = arith.constant 0 : i32
    %c0_i32_0 = arith.constant 0 : i32
    %c0_i32_1 = arith.constant 0 : i32
    return %c0_i32, %c0_i32_0 : i32, i32
  }
  func.func @transform_4(%arg0: i32, %arg1: i32, %arg2: i32) -> (i32, i32) {
    %c0_i32 = arith.constant 0 : i32
    %c0_i32_0 = arith.constant 0 : i32
    return %c0_i32, %arg1 : i32, i32
  }
  func.func @transform_5(%arg0: i32, %arg1: i32, %arg2: i32) -> (i32, i32) {
    %c0_i32 = arith.constant 0 : i32
    return %arg0, %arg1 : i32, i32
  }
}

</mosaic_0001>

<llo_original>
// kernel: tpu_custom_call.1
$region0: #{tpu_custom_call.1}
  #allocation0 [shape = 'u32[]', space=smem, size = 0x4, offset = 0x4, fixed_abs, tag = 'smem constant byte address 0x4 - core index']
  #allocation1 [shape = 'u32[72,128]{1,0:T(1,128)}', space=vmem, size = 0x9000, scoped, tag = 'internal scratch']
  #allocation2 [shape = 'f32[256,128]{1,0:T(8,128)}', space=vmem, size = 0x20000, scoped, tag = 'scratch operand']
  #allocation3 [shape = 'f32[256,128]{1,0:T(8,128)}', space=vmem, size = 0x20000, scoped, tag = 'scratch operand']
  %s0 = inlined_call_operand.hbm [shape: f32[512,128], index: 0, kind: input, shape index: {}]
  %s1 = inlined_call_operand.hbm [shape: f32[128,128], index: 1, kind: input, shape index: {}]
  %s2 = inlined_call_operand.vmem [shape: f32[1,128], index: 2, kind: input, shape index: {}]
  %s3 = inlined_call_operand.hbm [shape: f32[128,128], index: 3, kind: input, shape index: {}]
  %s4 = inlined_call_operand.hbm [shape: f32[128,128], index: 4, kind: input, shape index: {}]
  %s5 = inlined_call_operand.hbm [shape: f32[512,128], index: 5, kind: output, shape index: {}]
  %s6 = sld [smem:[#allocation0]]
  $region85: #{tpu_custom_call.1} parent=0
    _
  %s8 = ssub.s32 1, %s6
  %s9 = scalar_select 0, %s8, %s6
  $region1: #{tpu_custom_call.1} parent=0
    #allocation4 [shape = 'u8[262144]{0}', space=vmem, size = 0x40000, scoped, tag = 'input window, operand 0']
    #allocation5 [shape = 's32[2]{0}', space=sflag, size = 0x8, scoped, tag = 'scoped memory for tpu_custom_call.1']
    #allocation6 [shape = 's32[2]{0}', space=sflag, size = 0x8, scoped, tag = 'scoped memory for tpu_custom_call.1']
    #allocation7 [shape = 'u8[65536]{0}', space=vmem, size = 0x10000, scoped, tag = 'input window, operand 1, single buffered']
    #allocation8 [shape = 's32[1]{0}', space=sflag, size = 0x4, scoped, tag = 'scoped memory for tpu_custom_call.1']
    #allocation9 [shape = 'u8[65536]{0}', space=vmem, size = 0x10000, scoped, tag = 'input window, operand 3, single buffered']
    #allocation10 [shape = 'u8[65536]{0}', space=vmem, size = 0x10000, scoped, tag = 'input window, operand 4, single buffered']
    #allocation11 [shape = 's32[1]{0}', space=sflag, size = 0x4, scoped, tag = 'scoped memory for tpu_custom_call.1']
    #allocation12 [shape = 'u8[262144]{0}', space=vmem, size = 0x40000, scoped, tag = 'output window, operand 0']
    %10 = vsyncpa [#allocation5], 0
    %s11 = scalar_lea.sflag [#allocation5], 1
    %12 = vsyncpa %s11, 0
    %13 = vsyncpa [#allocation8], 0
    %14 = vsyncpa [#allocation11], 0
    %15 = vsyncpa [#allocation6], 0
    %s16 = scalar_lea.sflag [#allocation6], 1
    %17 = vsyncpa %s16, 0
    loop: start=0, step=1, limit=4
    $region2: #{tpu_custom_call.1} parent=1 // loop_pre_header
      _
    $region3: #{tpu_custom_call.1} parent=1 // loop_header
      %s19 = sphi 0, %s23
      %p20 = scmp.ge.s32.totalorder %s19, 4
      %s26 = sphi 0, %s45
      %s27 = sphi 0, %s41
      %s28 = sphi 0, %s37
      %s29 = sphi 0, %s26
      %s30 = sphi 0, %s27
      %s31 = sphi 0, %s28
      %s32 = sphi 0, %s29
      %s33 = sphi 0, %s30
      %s34 = sphi 0, %s31
      %s50 = sphi 0, %s52
      %s53 = sphi 0, %s50
      %s54 = sphi 0, %s53
      %s70 = sphi 0, %s54
      %s78 = sphi 0, %s80
      %s81 = sphi 0, %s78
      %s82 = sphi 0, %s81
      %s98 = sphi 0, %s82
      %s104 = sphi 0, %s106
      %s107 = sphi 0, %s104
      %s108 = sphi 0, %s107
      %s124 = sphi 0, %s108
      %s128 = sphi 0, %s128
      %s130 = sphi 0, %s128
      %s131 = sphi 0, %s130
      %s145 = sphi 0, %s131
      %s151 = sphi 0, %s153
      %s154 = sphi 0, %s151
      %s155 = sphi 0, %s154
      %s171 = sphi 0, %s155
      %s179 = sphi 0, %s181
      %s182 = sphi 0, %s179
      %s183 = sphi 0, %s182
      %s199 = sphi 0, %s183
    $region4: #{tpu_custom_call.1} parent=1 // loop_header_branch
      %22 = sbr.rel (%p20) target = $region8
    $region5: #{tpu_custom_call.1} parent=1 // loop_body
      %s24 = ssub.s32 %s19, 1
      %s25 = ssub.s32 %s19, 2
      %s35 = sadd.s32 1, %s28
      %p36 = scmp.ge.s32.totalorder %s35, 1
      %s37 = scalar_select %p36, 0, %s35
      %s38 = sadd.s32 1, %s27
      %s39 = scalar_select %p36, %s38, %s27
      %p40 = scmp.ge.s32.totalorder %s39, 1
      %s41 = scalar_select %p40, 0, %s39
      %s42 = sadd.s32 1, %s26
      %s43 = scalar_select %p40, %s42, %s26
      %p44 = scmp.ge.s32.totalorder %s43, 2
      %s45 = scalar_select %p44, 0, %s43
      %s46 = ssub.s32 %s26, %s45
      %s47 = ssub.s32 %s28, %s37
      %s48 = sor.u32 %s46, %s47
      %p49 = scmp.eq.s32.totalorder %s48, 0
      %s51 = sadd.s32 %s50, 1
      %s52 = scalar_select %p49, %s50, %s51
      %p55 = pneg %p49
      %p56 = scmp.eq.s32.totalorder %s19, 1
      %p57 = por %p55, %p56
      %p58 = scmp.ne.s32.totalorder %s50, %s53
      %p59 = scmp.eq.s32.totalorder %s19, 0
      %p60 = por %p58, %p59
      %p61 = scmp.ne.s32.totalorder %s50, %s53
      %p62 = scmp.eq.s32.totalorder %s24, 1
      %p63 = por %p61, %p62
      %p64 = scmp.ne.s32.totalorder %s53, %s54
      %p65 = scmp.eq.s32.totalorder %s24, 0
      %p66 = por %p64, %p65
      %p67 = scmp.ne.s32.totalorder %s53, %s54
      %p68 = scmp.eq.s32.totalorder %s25, 1
      %p69 = por %p67, %p68
      %p71 = scmp.ne.s32.totalorder %s54, %s70
      %p72 = scmp.eq.s32.totalorder %s25, 0
      %p73 = por %p71, %p72
      %s74 = ssub.s32 %s28, %s37
      %s75 = ssub.s32 %s27, %s41
      %s76 = sor.u32 %s74, %s75
      %p77 = scmp.eq.s32.totalorder %s76, 0
      %s79 = sadd.s32 %s78, 1
      %s80 = scalar_select %p77, %s78, %s79
      %p83 = pneg %p77
      %p84 = scmp.eq.s32.totalorder %s19, 1
      %p85 = por %p83, %p84
      %p86 = scmp.ne.s32.totalorder %s78, %s81
      %p87 = scmp.eq.s32.totalorder %s19, 0
      %p88 = por %p86, %p87
      %p89 = scmp.ne.s32.totalorder %s78, %s81
      %p90 = scmp.eq.s32.totalorder %s24, 1
      %p91 = por %p89, %p90
      %p92 = scmp.ne.s32.totalorder %s81, %s82
      %p93 = scmp.eq.s32.totalorder %s24, 0
      %p94 = por %p92, %p93
      %p95 = scmp.ne.s32.totalorder %s81, %s82
      %p96 = scmp.eq.s32.totalorder %s25, 1
      %p97 = por %p95, %p96
      %p99 = scmp.ne.s32.totalorder %s82, %s98
      %p100 = scmp.eq.s32.totalorder %s25, 0
      %p101 = por %p99, %p100
      %s102 = ssub.s32 %s27, %s41
      %p103 = scmp.eq.s32.totalorder %s102, 0
      %s105 = sadd.s32 %s104, 1
      %s106 = scalar_select %p103, %s104, %s105
      %p109 = pneg %p103
      %p110 = scmp.eq.s32.totalorder %s19, 1
      %p111 = por %p109, %p110
      %p112 = scmp.ne.s32.totalorder %s104, %s107
      %p113 = scmp.eq.s32.totalorder %s19, 0
      %p114 = por %p112, %p113
      %p115 = scmp.ne.s32.totalorder %s104, %s107
      %p116 = scmp.eq.s32.totalorder %s24, 1
      %p117 = por %p115, %p116
      %p118 = scmp.ne.s32.totalorder %s107, %s108
      %p119 = scmp.eq.s32.totalorder %s24, 0
      %p120 = por %p118, %p119
      %p121 = scmp.ne.s32.totalorder %s107, %s108
      %p122 = scmp.eq.s32.totalorder %s25, 1
      %p123 = por %p121, %p122
      %p125 = scmp.ne.s32.totalorder %s108, %s124
      %p126 = scmp.eq.s32.totalorder %s25, 0
      %p127 = por %p125, %p126
      %s129 = sadd.s32 %s128, 1
      %p132 = scmp.eq.s32.totalorder %s19, 1
      %p133 = scmp.ne.s32.totalorder %s128, %s130
      %p134 = scmp.eq.s32.totalorder %s19, 0
      %p135 = por %p133, %p134
      %p136 = scmp.ne.s32.totalorder %s128, %s130
      %p137 = scmp.eq.s32.totalorder %s24, 1
      %p138 = por %p136, %p137
      %p139 = scmp.ne.s32.totalorder %s130, %s131
      %p140 = scmp.eq.s32.totalorder %s24, 0
      %p141 = por %p139, %p140
      %p142 = scmp.ne.s32.totalorder %s130, %s131
      %p143 = scmp.eq.s32.totalorder %s25, 1
      %p144 = por %p142, %p143
      %p146 = scmp.ne.s32.totalorder %s131, %s145
      %p147 = scmp.eq.s32.totalorder %s25, 0
      %p148 = por %p146, %p147
      %s149 = ssub.s32 %s27, %s41
      %p150 = scmp.eq.s32.totalorder %s149, 0
      %s152 = sadd.s32 %s151, 1
      %s153 = scalar_select %p150, %s151, %s152
      %p156 = pneg %p150
      %p157 = scmp.eq.s32.totalorder %s19, 1
      %p158 = por %p156, %p157
      %p159 = scmp.ne.s32.totalorder %s151, %s154
      %p160 = scmp.eq.s32.totalorder %s19, 0
      %p161 = por %p159, %p160
      %p162 = scmp.ne.s32.totalorder %s151, %s154
      %p163 = scmp.eq.s32.totalorder %s24, 1
      %p164 = por %p162, %p163
      %p165 = scmp.ne.s32.totalorder %s154, %s155
      %p166 = scmp.eq.s32.totalorder %s24, 0
      %p167 = por %p165, %p166
      %p168 = scmp.ne.s32.totalorder %s154, %s155
      %p169 = scmp.eq.s32.totalorder %s25, 1
      %p170 = por %p168, %p169
      %p172 = scmp.ne.s32.totalorder %s155, %s171
      %p173 = scmp.eq.s32.totalorder %s25, 0
      %p174 = por %p172, %p173
      %s175 = ssub.s32 %s26, %s45
      %s176 = ssub.s32 %s27, %s41
      %s177 = sor.u32 %s175, %s176
      %p178 = scmp.eq.s32.totalorder %s177, 0
      %s180 = sadd.s32 %s179, 1
      %s181 = scalar_select %p178, %s179, %s180
      %p184 = pneg %p178
      %p185 = scmp.eq.s32.totalorder %s19, 1
      %p186 = por %p184, %p185
      %p187 = scmp.ne.s32.totalorder %s179, %s182
      %p188 = scmp.eq.s32.totalorder %s19, 0
      %p189 = por %p187, %p188
      %p190 = scmp.ne.s32.totalorder %s179, %s182
      %p191 = scmp.eq.s32.totalorder %s24, 1
      %p192 = por %p190, %p191
      %p193 = scmp.ne.s32.totalorder %s182, %s183
      %p194 = scmp.eq.s32.totalorder %s24, 0
      %p195 = por %p193, %p194
      %p196 = scmp.ne.s32.totalorder %s182, %s183
      %p197 = scmp.eq.s32.totalorder %s25, 1
      %p198 = por %p196, %p197
      %p200 = scmp.ne.s32.totalorder %s183, %s199
      %p201 = scmp.eq.s32.totalorder %s25, 0
      %p202 = por %p200, %p201
      %p203 = scmp.le.s32.totalorder 1, %s19
      %p204 = scmp.lt.s32.totalorder %s19, 3
      %p205 = pnand %p203, %p204
      %p206 = pneg %p205
      // Predicated region
      $region9: #{tpu_custom_call.1} parent=5 // pred_check
        _
      $region10: #{tpu_custom_call.1} parent=5 // pred_check_branch
        %208 = sbr.rel (%p205) target = $region12
      $region11: #{tpu_custom_call.1} parent=5 // pred_region
        %s209 = ssub.s32 %s19, 1
        // Predicated region
        $region13: #{tpu_custom_call.1} parent=11 // pred_check
          %p210 = pneg %p94
        $region14: #{tpu_custom_call.1} parent=11 // pred_check_branch
          %212 = sbr.rel (%p210) target = $region16
        $region15: #{tpu_custom_call.1} parent=11 // pred_region
          %s213 = smul.u32 16, %s31
          %215 = vsyncadd [#allocation8], 0
          %s216 = sadd.s32 %s30, %s213
          %s217 = smul.addr %s216, 8
          %s218 = scalar_lea.hbm %s1, %s217
          %s219 = sshll.u32 %s218, 4
          %s220 = int_to_ptr.hbm [resolvable:$true] %s219
          %s221 = sshll.u32 [#allocation7], 4
          %s222 = int_to_ptr.vmem [resolvable:$true] %s221
          %227 = dma.hbm_to_vmem [thread:$0]  %s220, 2048, %s222, [#allocation8], 128, 128, 8
        $region16: #{tpu_custom_call.1} parent=11 // pred_fallthru
          _
        // Predicated region
        $region17: #{tpu_custom_call.1} parent=11 // pred_check
          %p228 = pneg %p120
        $region18: #{tpu_custom_call.1} parent=11 // pred_check_branch
          %230 = sbr.rel (%p228) target = $region20
        $region19: #{tpu_custom_call.1} parent=11 // pred_region
          %p231 = scmp.lt.s32.totalorder %s30, 0
          %s232 = scalar_select %p231, %s30, 0
          %s233 = scalar_lea.vmem %s2, %s232
        $region20: #{tpu_custom_call.1} parent=11 // pred_fallthru
          _
        // Predicated region
        $region21: #{tpu_custom_call.1} parent=11 // pred_check
          %p234 = pneg %p141
        $region22: #{tpu_custom_call.1} parent=11 // pred_check_branch
          %236 = sbr.rel (%p234) target = $region24
        $region23: #{tpu_custom_call.1} parent=11 // pred_region
          %238 = vsyncadd [#allocation8], 0
          %s239 = sshll.u32 %s3, 4
          %s240 = int_to_ptr.hbm [resolvable:$true] %s239
          %s241 = sshll.u32 [#allocation9], 4
          %s242 = int_to_ptr.vmem [resolvable:$true] %s241
          %247 = dma.hbm_to_vmem [thread:$0]  %s240, 2048, %s242, [#allocation8], 128, 128, 8
        $region24: #{tpu_custom_call.1} parent=11 // pred_fallthru
          _
        // Predicated region
        $region25: #{tpu_custom_call.1} parent=11 // pred_check
          %p248 = pneg %p167
        $region26: #{tpu_custom_call.1} parent=11 // pred_check_branch
          %250 = sbr.rel (%p248) target = $region28
        $region27: #{tpu_custom_call.1} parent=11 // pred_region
          %252 = vsyncadd [#allocation11], 0
          %s253 = smul.addr %s30, 8
          %s254 = scalar_lea.hbm %s4, %s253
          %s255 = sshll.u32 %s254, 4
          %s256 = int_to_ptr.hbm [resolvable:$true] %s255
          %s257 = sshll.u32 [#allocation10], 4
          %s258 = int_to_ptr.vmem [resolvable:$true] %s257
          %263 = dma.hbm_to_vmem [thread:$0]  %s256, 2048, %s258, [#allocation11], 128, 128, 8
        $region28: #{tpu_custom_call.1} parent=11 // pred_fallthru
          _
      $region12: #{tpu_custom_call.1} parent=5 // pred_fallthru
        _
      %p264 = scmp.lt.s32.totalorder %s19, 2
      // Predicated region
      $region29: #{tpu_custom_call.1} parent=5 // pred_check
        %p265 = pneg %p264
      $region30: #{tpu_custom_call.1} parent=5 // pred_check_branch
        %267 = sbr.rel (%p265) target = $region32
      $region31: #{tpu_custom_call.1} parent=5 // pred_region
        // Predicated region
        $region33: #{tpu_custom_call.1} parent=31 // pred_check
          %p268 = pneg %p60
        $region34: #{tpu_custom_call.1} parent=31 // pred_check_branch
          %270 = sbr.rel (%p268) target = $region36
        $region35: #{tpu_custom_call.1} parent=31 // pred_region
          %s271 = sand.u32 %s50, 1
          %s272 = scalar_lea.sflag [#allocation5], %s271
          %s273 = sand.u32 %s50, 1
          %s274 = smul.addr %s273, 256
          %s275 = scalar_lea.vmem [#allocation4], %s274
          %s276 = smul.u32 32, %s26
          %278 = vsyncadd %s272, 0
          %s279 = sadd.s32 %s28, %s276
          %s280 = smul.addr %s279, 8
          %s281 = scalar_lea.hbm %s0, %s280
          %s282 = sshll.u32 %s281, 4
          %s283 = int_to_ptr.hbm [resolvable:$true] %s282
          %s284 = sshll.u32 %s275, 4
          %s285 = int_to_ptr.vmem [resolvable:$true] %s284
          %290 = dma.hbm_to_vmem [thread:$0]  %s283, 4096, %s285, %s272, 128, 128, 8
        $region36: #{tpu_custom_call.1} parent=31 // pred_fallthru
          _
      $region32: #{tpu_custom_call.1} parent=5 // pred_fallthru
        _
      %p291 = scmp.le.s32.totalorder 1, %s19
      %p292 = scmp.lt.s32.totalorder %s19, 3
      %p293 = pnand %p291, %p292
      %p294 = pneg %p293
      // Predicated region
      $region37: #{tpu_custom_call.1} parent=5 // pred_check
        _
      $region38: #{tpu_custom_call.1} parent=5 // pred_check_branch
        %296 = sbr.rel (%p293) target = $region40
      $region39: #{tpu_custom_call.1} parent=5 // pred_region
        %s297 = ssub.s32 %s19, 1
        %s298 = sand.u32 %s53, 1
        %s299 = scalar_lea.sflag [#allocation5], %s298
        %s300 = sand.u32 %s53, 1
        %s301 = smul.addr %s300, 256
        %s302 = scalar_lea.vmem [#allocation4], %s301
        // Predicated region
        $region41: #{tpu_custom_call.1} parent=39 // pred_check
          %p303 = pneg %p66
        $region42: #{tpu_custom_call.1} parent=39 // pred_check_branch
          %305 = sbr.rel (%p303) target = $region44
        $region43: #{tpu_custom_call.1} parent=39 // pred_region
          %307 = dma.done %s299, 4096
        $region44: #{tpu_custom_call.1} parent=39 // pred_fallthru
          _
        // Predicated region
        $region45: #{tpu_custom_call.1} parent=39 // pred_check
          %p308 = pneg %p94
        $region46: #{tpu_custom_call.1} parent=39 // pred_check_branch
          %310 = sbr.rel (%p308) target = $region48
        $region47: #{tpu_custom_call.1} parent=39 // pred_region
          %312 = dma.done [#allocation8], 2048
        $region48: #{tpu_custom_call.1} parent=39 // pred_fallthru
          _
        // Predicated region
        $region49: #{tpu_custom_call.1} parent=39 // pred_check
          %p313 = pneg %p141
        $region50: #{tpu_custom_call.1} parent=39 // pred_check_branch
          %315 = sbr.rel (%p313) target = $region52
        $region51: #{tpu_custom_call.1} parent=39 // pred_region
          %317 = dma.done [#allocation8], 2048
        $region52: #{tpu_custom_call.1} parent=39 // pred_fallthru
          _
        // Predicated region
        $region53: #{tpu_custom_call.1} parent=39 // pred_check
          %p318 = pneg %p167
        $region54: #{tpu_custom_call.1} parent=39 // pred_check_branch
          %320 = sbr.rel (%p318) target = $region56
        $region55: #{tpu_custom_call.1} parent=39 // pred_region
          %322 = dma.done [#allocation11], 2048
        $region56: #{tpu_custom_call.1} parent=39 // pred_fallthru
          _
        %s323 = sand.u32 %s53, 1
        %s324 = scalar_lea.sflag [#allocation5], %s323
        %s325 = sand.u32 %s53, 1
        %s326 = smul.addr %s325, 256
        %s327 = scalar_lea.vmem [#allocation4], %s326
        %p328 = pneg %p66
        %p329 = pneg %p63
        %p330 = pneg %p94
        %p331 = pneg %p91
        %p332 = scmp.lt.s32.totalorder %s30, 0
        %s333 = scalar_select %p332, %s30, 0
        %s334 = scalar_lea.vmem %s2, %s333
        %p335 = pneg %p120
        %p336 = pneg %p117
        %p337 = pneg %p141
        %p338 = pneg %p138
        %p339 = pneg %p167
        %p340 = pneg %p164
        %p341 = pneg %p195
        %p342 = pneg %p192
        %s343 = sand.u32 %s182, 1
        %s344 = scalar_lea.sflag [#allocation6], %s343
        %s345 = sand.u32 %s182, 1
        %s346 = smul.addr %s345, 256
        %s347 = scalar_lea.vmem [#allocation12], %s346
        %s348 = smul.u32 32, %s29
        %s349 = smul.u32 16, %s31
        %p350 = scmp.lt.s32.totalorder %s30, 0
        %s351 = scalar_select %p350, %s30, 0
        %s352 = scalar_lea.vmem %s2, %s351
        %s353 = smul.u32 32, %s29
        %p354 = scmp.eq.s32.totalorder %s31, 0
        // Predicated region
        $region57: #{tpu_custom_call.1} parent=39 // pred_check
          %p355 = pneg %p354
        $region58: #{tpu_custom_call.1} parent=39 // pred_check_branch
          %357 = sbr.rel (%p355) target = $region60
        $region59: #{tpu_custom_call.1} parent=39 // pred_region
          %358 = vst [vmem:[#allocation2] sm:$0xff] 0.0
          %359 = vst [vmem:[#allocation2 + $0x8] sm:$0xff] 0.0
          %360 = vst [vmem:[#allocation2 + $0x10] sm:$0xff] 0.0
          %361 = vst [vmem:[#allocation2 + $0x18] sm:$0xff] 0.0
          %362 = vst [vmem:[#allocation2 + $0x20] sm:$0xff] 0.0
          %363 = vst [vmem:[#allocation2 + $0x28] sm:$0xff] 0.0
          %364 = vst [vmem:[#allocation2 + $0x30] sm:$0xff] 0.0
          %365 = vst [vmem:[#allocation2 + $0x38] sm:$0xff] 0.0
          %366 = vst [vmem:[#allocation2 + $0x40] sm:$0xff] 0.0
          %367 = vst [vmem:[#allocation2 + $0x48] sm:$0xff] 0.0
          %368 = vst [vmem:[#allocation2 + $0x50] sm:$0xff] 0.0
          %369 = vst [vmem:[#allocation2 + $0x58] sm:$0xff] 0.0
          %370 = vst [vmem:[#allocation2 + $0x60] sm:$0xff] 0.0
          %371 = vst [vmem:[#allocation2 + $0x68] sm:$0xff] 0.0
          %372 = vst [vmem:[#allocation2 + $0x70] sm:$0xff] 0.0
          %373 = vst [vmem:[#allocation2 + $0x78] sm:$0xff] 0.0
          %374 = vst [vmem:[#allocation2 + $0x80] sm:$0xff] 0.0
          %375 = vst [vmem:[#allocation2 + $0x88] sm:$0xff] 0.0
          %376 = vst [vmem:[#allocation2 + $0x90] sm:$0xff] 0.0
          %377 = vst [vmem:[#allocation2 + $0x98] sm:$0xff] 0.0
          %378 = vst [vmem:[#allocation2 + $0xa0] sm:$0xff] 0.0
          %379 = vst [vmem:[#allocation2 + $0xa8] sm:$0xff] 0.0
          %380 = vst [vmem:[#allocation2 + $0xb0] sm:$0xff] 0.0
          %381 = vst [vmem:[#allocation2 + $0xb8] sm:$0xff] 0.0
          %382 = vst [vmem:[#allocation2 + $0xc0] sm:$0xff] 0.0
          %383 = vst [vmem:[#allocation2 + $0xc8] sm:$0xff] 0.0
          %384 = vst [vmem:[#allocation2 + $0xd0] sm:$0xff] 0.0
          %385 = vst [vmem:[#allocation2 + $0xd8] sm:$0xff] 0.0
          %386 = vst [vmem:[#allocation2 + $0xe0] sm:$0xff] 0.0
          %387 = vst [vmem:[#allocation2 + $0xe8] sm:$0xff] 0.0
          %388 = vst [vmem:[#allocation2 + $0xf0] sm:$0xff] 0.0
          %389 = vst [vmem:[#allocation2 + $0xf8] sm:$0xff] 0.0
        $region60: #{tpu_custom_call.1} parent=39 // pred_fallthru
          _
        %v390 = vld [vmem:[%s302] sm:$0xff]
        %v391 = vld [vmem:[%s302 + $0x8] sm:$0xff]
        %v392 = vld [vmem:[%s302 + $0x10] sm:$0xff]
        %v393 = vld [vmem:[%s302 + $0x18] sm:$0xff]
        %v394 = vld [vmem:[%s302 + $0x20] sm:$0xff]
        %v395 = vld [vmem:[%s302 + $0x28] sm:$0xff]
        %v396 = vld [vmem:[%s302 + $0x30] sm:$0xff]
        %v397 = vld [vmem:[%s302 + $0x38] sm:$0xff]
        %v398 = vld [vmem:[%s302 + $0x40] sm:$0xff]
        %v399 = vld [vmem:[%s302 + $0x48] sm:$0xff]
        %v400 = vld [vmem:[%s302 + $0x50] sm:$0xff]
        %v401 = vld [vmem:[%s302 + $0x58] sm:$0xff]
        %v402 = vld [vmem:[%s302 + $0x60] sm:$0xff]
        %v403 = vld [vmem:[%s302 + $0x68] sm:$0xff]
        %v404 = vld [vmem:[%s302 + $0x70] sm:$0xff]
        %v405 = vld [vmem:[%s302 + $0x78] sm:$0xff]
        %v406 = vld [vmem:[%s302 + $0x80] sm:$0xff]
        %v407 = vld [vmem:[%s302 + $0x88] sm:$0xff]
        %v408 = vld [vmem:[%s302 + $0x90] sm:$0xff]
        %v409 = vld [vmem:[%s302 + $0x98] sm:$0xff]
        %v410 = vld [vmem:[%s302 + $0xa0] sm:$0xff]
        %v411 = vld [vmem:[%s302 + $0xa8] sm:$0xff]
        %v412 = vld [vmem:[%s302 + $0xb0] sm:$0xff]
        %v413 = vld [vmem:[%s302 + $0xb8] sm:$0xff]
        %v414 = vld [vmem:[%s302 + $0xc0] sm:$0xff]
        %v415 = vld [vmem:[%s302 + $0xc8] sm:$0xff]
        %v416 = vld [vmem:[%s302 + $0xd0] sm:$0xff]
        %v417 = vld [vmem:[%s302 + $0xd8] sm:$0xff]
        %v418 = vld [vmem:[%s302 + $0xe0] sm:$0xff]
        %v419 = vld [vmem:[%s302 + $0xe8] sm:$0xff]
        %v420 = vld [vmem:[%s302 + $0xf0] sm:$0xff]
        %v421 = vld [vmem:[%s302 + $0xf8] sm:$0xff]
        %v422 = vld [vmem:[#allocation2] sm:$0xff]
        %v423 = vld [vmem:[#allocation2 + $0x8] sm:$0xff]
        %v424 = vld [vmem:[#allocation2 + $0x10] sm:$0xff]
        %v425 = vld [vmem:[#allocation2 + $0x18] sm:$0xff]
        %v426 = vld [vmem:[#allocation2 + $0x20] sm:$0xff]
        %v427 = vld [vmem:[#allocation2 + $0x28] sm:$0xff]
        %v428 = vld [vmem:[#allocation2 + $0x30] sm:$0xff]
        %v429 = vld [vmem:[#allocation2 + $0x38] sm:$0xff]
        %v430 = vld [vmem:[#allocation2 + $0x40] sm:$0xff]
        %v431 = vld [vmem:[#allocation2 + $0x48] sm:$0xff]
        %v432 = vld [vmem:[#allocation2 + $0x50] sm:$0xff]
        %v433 = vld [vmem:[#allocation2 + $0x58] sm:$0xff]
        %v434 = vld [vmem:[#allocation2 + $0x60] sm:$0xff]
        %v435 = vld [vmem:[#allocation2 + $0x68] sm:$0xff]
        %v436 = vld [vmem:[#allocation2 + $0x70] sm:$0xff]
        %v437 = vld [vmem:[#allocation2 + $0x78] sm:$0xff]
        %v438 = vld [vmem:[#allocation2 + $0x80] sm:$0xff]
        %v439 = vld [vmem:[#allocation2 + $0x88] sm:$0xff]
        %v440 = vld [vmem:[#allocation2 + $0x90] sm:$0xff]
        %v441 = vld [vmem:[#allocation2 + $0x98] sm:$0xff]
        %v442 = vld [vmem:[#allocation2 + $0xa0] sm:$0xff]
        %v443 = vld [vmem:[#allocation2 + $0xa8] sm:$0xff]
        %v444 = vld [vmem:[#allocation2 + $0xb0] sm:$0xff]
        %v445 = vld [vmem:[#allocation2 + $0xb8] sm:$0xff]
        %v446 = vld [vmem:[#allocation2 + $0xc0] sm:$0xff]
        %v447 = vld [vmem:[#allocation2 + $0xc8] sm:$0xff]
        %v448 = vld [vmem:[#allocation2 + $0xd0] sm:$0xff]
        %v449 = vld [vmem:[#allocation2 + $0xd8] sm:$0xff]
        %v450 = vld [vmem:[#allocation2 + $0xe0] sm:$0xff]
        %v451 = vld [vmem:[#allocation2 + $0xe8] sm:$0xff]
        %v452 = vld [vmem:[#allocation2 + $0xf0] sm:$0xff]
        %v453 = vld [vmem:[#allocation2 + $0xf8] sm:$0xff]
        %v454 = vld [vmem:[#allocation7] sm:$0xff]
        %v455 = vld [vmem:[#allocation7 + $0x8] sm:$0xff]
        %v456 = vld [vmem:[#allocation7 + $0x10] sm:$0xff]
        %v457 = vld [vmem:[#allocation7 + $0x18] sm:$0xff]
        %v458 = vld [vmem:[#allocation7 + $0x20] sm:$0xff]
        %v459 = vld [vmem:[#allocation7 + $0x28] sm:$0xff]
        %v460 = vld [vmem:[#allocation7 + $0x30] sm:$0xff]
        %v461 = vld [vmem:[#allocation7 + $0x38] sm:$0xff]
        %v462 = vld [vmem:[#allocation7 + $0x40] sm:$0xff]
        %v463 = vld [vmem:[#allocation7 + $0x48] sm:$0xff]
        %v464 = vld [vmem:[#allocation7 + $0x50] sm:$0xff]
        %v465 = vld [vmem:[#allocation7 + $0x58] sm:$0xff]
        %v466 = vld [vmem:[#allocation7 + $0x60] sm:$0xff]
        %v467 = vld [vmem:[#allocation7 + $0x68] sm:$0xff]
        %v468 = vld [vmem:[#allocation7 + $0x70] sm:$0xff]
        %v469 = vld [vmem:[#allocation7 + $0x78] sm:$0xff]
        %470 = vmatpush.msra.mxu0 %v469
        %471 = vmatpush.msra.mxu0 %v468
        %472 = vmatpush.msra.mxu0 %v467
        %473 = vmatpush.msra.mxu0 %v466
        %474 = vmatpush.msra.mxu0 %v465
        %475 = vmatpush.msra.mxu0 %v464
        %476 = vmatpush.msra.mxu0 %v463
        %477 = vmatpush.msra.mxu0 %v462
        %478 = vmatpush.msra.mxu0 %v461
        %479 = vmatpush.msra.mxu0 %v460
        %480 = vmatpush.msra.mxu0 %v459
        %481 = vmatpush.msra.mxu0 %v458
        %482 = vmatpush.msra.mxu0 %v457
        %483 = vmatpush.msra.mxu0 %v456
        %484 = vmatpush.msra.mxu0 %v455
        %485 = vmatpush.msra.mxu0 %v454
        %486 = vmatmul.f32.gmra.mxu0 %v390
        %v487 = vpop.f32.mrf.mxu0
        %v488 = vadd.f32 0.0, %v487
        %489 = vmatmul.f32.gmra.mxu0 %v391
        %v490 = vpop.f32.mrf.mxu0
        %v491 = vadd.f32 0.0, %v490
        %492 = vmatmul.f32.gmra.mxu0 %v392
        %v493 = vpop.f32.mrf.mxu0
        %v494 = vadd.f32 0.0, %v493
        %495 = vmatmul.f32.gmra.mxu0 %v393
        %v496 = vpop.f32.mrf.mxu0
        %v497 = vadd.f32 0.0, %v496
        %498 = vmatmul.f32.gmra.mxu0 %v394
        %v499 = vpop.f32.mrf.mxu0
        %v500 = vadd.f32 0.0, %v499
        %501 = vmatmul.f32.gmra.mxu0 %v395
        %v502 = vpop.f32.mrf.mxu0
        %v503 = vadd.f32 0.0, %v502
        %504 = vmatmul.f32.gmra.mxu0 %v396
        %v505 = vpop.f32.mrf.mxu0
        %v506 = vadd.f32 0.0, %v505
        %507 = vmatmul.f32.gmra.mxu0 %v397
        %v508 = vpop.f32.mrf.mxu0
        %v509 = vadd.f32 0.0, %v508
        %510 = vmatmul.f32.gmra.mxu0 %v398
        %v511 = vpop.f32.mrf.mxu0
        %v512 = vadd.f32 0.0, %v511
        %513 = vmatmul.f32.gmra.mxu0 %v399
        %v514 = vpop.f32.mrf.mxu0
        %v515 = vadd.f32 0.0, %v514
        %516 = vmatmul.f32.gmra.mxu0 %v400
        %v517 = vpop.f32.mrf.mxu0
        %v518 = vadd.f32 0.0, %v517
        %519 = vmatmul.f32.gmra.mxu0 %v401
        %v520 = vpop.f32.mrf.mxu0
        %v521 = vadd.f32 0.0, %v520
        %522 = vmatmul.f32.gmra.mxu0 %v402
        %v523 = vpop.f32.mrf.mxu0
        %v524 = vadd.f32 0.0, %v523
        %525 = vmatmul.f32.gmra.mxu0 %v403
        %v526 = vpop.f32.mrf.mxu0
        %v527 = vadd.f32 0.0, %v526
        %528 = vmatmul.f32.gmra.mxu0 %v404
        %v529 = vpop.f32.mrf.mxu0
        %v530 = vadd.f32 0.0, %v529
        %531 = vmatmul.f32.gmra.mxu0 %v405
        %v532 = vpop.f32.mrf.mxu0
        %v533 = vadd.f32 0.0, %v532
        %534 = vmatmul.f32.gmra.mxu0 %v406
        %v535 = vpop.f32.mrf.mxu0
        %v536 = vadd.f32 0.0, %v535
        %537 = vmatmul.f32.gmra.mxu0 %v407
        %v538 = vpop.f32.mrf.mxu0
        %v539 = vadd.f32 0.0, %v538
        %540 = vmatmul.f32.gmra.mxu0 %v408
        %v541 = vpop.f32.mrf.mxu0
        %v542 = vadd.f32 0.0, %v541
        %543 = vmatmul.f32.gmra.mxu0 %v409
        %v544 = vpop.f32.mrf.mxu0
        %v545 = vadd.f32 0.0, %v544
        %546 = vmatmul.f32.gmra.mxu0 %v410
        %v547 = vpop.f32.mrf.mxu0
        %v548 = vadd.f32 0.0, %v547
        %549 = vmatmul.f32.gmra.mxu0 %v411
        %v550 = vpop.f32.mrf.mxu0
        %v551 = vadd.f32 0.0, %v550
        %552 = vmatmul.f32.gmra.mxu0 %v412
        %v553 = vpop.f32.mrf.mxu0
        %v554 = vadd.f32 0.0, %v553
        %555 = vmatmul.f32.gmra.mxu0 %v413
        %v556 = vpop.f32.mrf.mxu0
        %v557 = vadd.f32 0.0, %v556
        %558 = vmatmul.f32.gmra.mxu0 %v414
        %v559 = vpop.f32.mrf.mxu0
        %v560 = vadd.f32 0.0, %v559
        %561 = vmatmul.f32.gmra.mxu0 %v415
        %v562 = vpop.f32.mrf.mxu0
        %v563 = vadd.f32 0.0, %v562
        %564 = vmatmul.f32.gmra.mxu0 %v416
        %v565 = vpop.f32.mrf.mxu0
        %v566 = vadd.f32 0.0, %v565
        %567 = vmatmul.f32.gmra.mxu0 %v417
        %v568 = vpop.f32.mrf.mxu0
        %v569 = vadd.f32 0.0, %v568
        %570 = vmatmul.f32.gmra.mxu0 %v418
        %v571 = vpop.f32.mrf.mxu0
        %v572 = vadd.f32 0.0, %v571
        %573 = vmatmul.f32.gmra.mxu0 %v419
        %v574 = vpop.f32.mrf.mxu0
        %v575 = vadd.f32 0.0, %v574
        %576 = vmatmul.f32.gmra.mxu0 %v420
        %v577 = vpop.f32.mrf.mxu0
        %v578 = vadd.f32 0.0, %v577
        %579 = vmatmul.f32.gmra.mxu0 %v421
        %v580 = vpop.f32.mrf.mxu0
        %v581 = vadd.f32 0.0, %v580
        %582 = vdwg.mxu0
        %v583 = vadd.f32 %v422, %v488
        %v584 = vadd.f32 %v423, %v491
        %v585 = vadd.f32 %v424, %v494
        %v586 = vadd.f32 %v425, %v497
        %v587 = vadd.f32 %v426, %v500
        %v588 = vadd.f32 %v427, %v503
        %v589 = vadd.f32 %v428, %v506
        %v590 = vadd.f32 %v429, %v509
        %v591 = vadd.f32 %v430, %v512
        %v592 = vadd.f32 %v431, %v515
        %v593 = vadd.f32 %v432, %v518
        %v594 = vadd.f32 %v433, %v521
        %v595 = vadd.f32 %v434, %v524
        %v596 = vadd.f32 %v435, %v527
        %v597 = vadd.f32 %v436, %v530
        %v598 = vadd.f32 %v437, %v533
        %v599 = vadd.f32 %v438, %v536
        %v600 = vadd.f32 %v439, %v539
        %v601 = vadd.f32 %v440, %v542
        %v602 = vadd.f32 %v441, %v545
        %v603 = vadd.f32 %v442, %v548
        %v604 = vadd.f32 %v443, %v551
        %v605 = vadd.f32 %v444, %v554
        %v606 = vadd.f32 %v445, %v557
        %v607 = vadd.f32 %v446, %v560
        %v608 = vadd.f32 %v447, %v563
        %v609 = vadd.f32 %v448, %v566
        %v610 = vadd.f32 %v449, %v569
        %v611 = vadd.f32 %v450, %v572
        %v612 = vadd.f32 %v451, %v575
        %v613 = vadd.f32 %v452, %v578
        %v614 = vadd.f32 %v453, %v581
        %615 = vst [vmem:[#allocation2] sm:$0xff] %v583
        %616 = vst [vmem:[#allocation2 + $0x8] sm:$0xff] %v584
        %617 = vst [vmem:[#allocation2 + $0x10] sm:$0xff] %v585
        %618 = vst [vmem:[#allocation2 + $0x18] sm:$0xff] %v586
        %619 = vst [vmem:[#allocation2 + $0x20] sm:$0xff] %v587
        %620 = vst [vmem:[#allocation2 + $0x28] sm:$0xff] %v588
        %621 = vst [vmem:[#allocation2 + $0x30] sm:$0xff] %v589
        %622 = vst [vmem:[#allocation2 + $0x38] sm:$0xff] %v590
        %623 = vst [vmem:[#allocation2 + $0x40] sm:$0xff] %v591
        %624 = vst [vmem:[#allocation2 + $0x48] sm:$0xff] %v592
        %625 = vst [vmem:[#allocation2 + $0x50] sm:$0xff] %v593
        %626 = vst [vmem:[#allocation2 + $0x58] sm:$0xff] %v594
        %627 = vst [vmem:[#allocation2 + $0x60] sm:$0xff] %v595
        %628 = vst [vmem:[#allocation2 + $0x68] sm:$0xff] %v596
        %629 = vst [vmem:[#allocation2 + $0x70] sm:$0xff] %v597
        %630 = vst [vmem:[#allocation2 + $0x78] sm:$0xff] %v598
        %631 = vst [vmem:[#allocation2 + $0x80] sm:$0xff] %v599
        %632 = vst [vmem:[#allocation2 + $0x88] sm:$0xff] %v600
        %633 = vst [vmem:[#allocation2 + $0x90] sm:$0xff] %v601
        %634 = vst [vmem:[#allocation2 + $0x98] sm:$0xff] %v602
        %635 = vst [vmem:[#allocation2 + $0xa0] sm:$0xff] %v603
        %636 = vst [vmem:[#allocation2 + $0xa8] sm:$0xff] %v604
        %637 = vst [vmem:[#allocation2 + $0xb0] sm:$0xff] %v605
        %638 = vst [vmem:[#allocation2 + $0xb8] sm:$0xff] %v606
        %639 = vst [vmem:[#allocation2 + $0xc0] sm:$0xff] %v607
        %640 = vst [vmem:[#allocation2 + $0xc8] sm:$0xff] %v608
        %641 = vst [vmem:[#allocation2 + $0xd0] sm:$0xff] %v609
        %642 = vst [vmem:[#allocation2 + $0xd8] sm:$0xff] %v610
        %643 = vst [vmem:[#allocation2 + $0xe0] sm:$0xff] %v611
        %644 = vst [vmem:[#allocation2 + $0xe8] sm:$0xff] %v612
        %645 = vst [vmem:[#allocation2 + $0xf0] sm:$0xff] %v613
        %646 = vst [vmem:[#allocation2 + $0xf8] sm:$0xff] %v614
        %p647 = scmp.eq.s32.totalorder %s30, 0
        // Predicated region
        $region61: #{tpu_custom_call.1} parent=39 // pred_check
          %p648 = pneg %p647
        $region62: #{tpu_custom_call.1} parent=39 // pred_check_branch
          %650 = sbr.rel (%p648) target = $region64
        $region63: #{tpu_custom_call.1} parent=39 // pred_region
          // Predicated region
          $region65: #{tpu_custom_call.1} parent=63 // pred_check
            %p651 = pneg %p354
          $region66: #{tpu_custom_call.1} parent=63 // pred_check_branch
            %653 = sbr.rel (%p651) target = $region68
          $region67: #{tpu_custom_call.1} parent=63 // pred_region
            %654 = vst [vmem:[#allocation3] sm:$0xff] 0.0
            %655 = vst [vmem:[#allocation3 + $0x8] sm:$0xff] 0.0
            %656 = vst [vmem:[#allocation3 + $0x10] sm:$0xff] 0.0
            %657 = vst [vmem:[#allocation3 + $0x18] sm:$0xff] 0.0
            %658 = vst [vmem:[#allocation3 + $0x20] sm:$0xff] 0.0
            %659 = vst [vmem:[#allocation3 + $0x28] sm:$0xff] 0.0
            %660 = vst [vmem:[#allocation3 + $0x30] sm:$0xff] 0.0
            %661 = vst [vmem:[#allocation3 + $0x38] sm:$0xff] 0.0
            %662 = vst [vmem:[#allocation3 + $0x40] sm:$0xff] 0.0
            %663 = vst [vmem:[#allocation3 + $0x48] sm:$0xff] 0.0
            %664 = vst [vmem:[#allocation3 + $0x50] sm:$0xff] 0.0
            %665 = vst [vmem:[#allocation3 + $0x58] sm:$0xff] 0.0
            %666 = vst [vmem:[#allocation3 + $0x60] sm:$0xff] 0.0
            %667 = vst [vmem:[#allocation3 + $0x68] sm:$0xff] 0.0
            %668 = vst [vmem:[#allocation3 + $0x70] sm:$0xff] 0.0
            %669 = vst [vmem:[#allocation3 + $0x78] sm:$0xff] 0.0
            %670 = vst [vmem:[#allocation3 + $0x80] sm:$0xff] 0.0
            %671 = vst [vmem:[#allocation3 + $0x88] sm:$0xff] 0.0
            %672 = vst [vmem:[#allocation3 + $0x90] sm:$0xff] 0.0
            %673 = vst [vmem:[#allocation3 + $0x98] sm:$0xff] 0.0
            %674 = vst [vmem:[#allocation3 + $0xa0] sm:$0xff] 0.0
            %675 = vst [vmem:[#allocation3 + $0xa8] sm:$0xff] 0.0
            %676 = vst [vmem:[#allocation3 + $0xb0] sm:$0xff] 0.0
            %677 = vst [vmem:[#allocation3 + $0xb8] sm:$0xff] 0.0
            %678 = vst [vmem:[#allocation3 + $0xc0] sm:$0xff] 0.0
            %679 = vst [vmem:[#allocation3 + $0xc8] sm:$0xff] 0.0
            %680 = vst [vmem:[#allocation3 + $0xd0] sm:$0xff] 0.0
            %681 = vst [vmem:[#allocation3 + $0xd8] sm:$0xff] 0.0
            %682 = vst [vmem:[#allocation3 + $0xe0] sm:$0xff] 0.0
            %683 = vst [vmem:[#allocation3 + $0xe8] sm:$0xff] 0.0
            %684 = vst [vmem:[#allocation3 + $0xf0] sm:$0xff] 0.0
            %685 = vst [vmem:[#allocation3 + $0xf8] sm:$0xff] 0.0
          $region68: #{tpu_custom_call.1} parent=63 // pred_fallthru
            _
          %s686 = smul.u32 %s31, 128
          %v687 = vld [vmem:[#allocation3] sm:$0xff]
          %v688 = vld [vmem:[#allocation3 + $0x8] sm:$0xff]
          %v689 = vld [vmem:[#allocation3 + $0x10] sm:$0xff]
          %v690 = vld [vmem:[#allocation3 + $0x18] sm:$0xff]
          %v691 = vld [vmem:[#allocation3 + $0x20] sm:$0xff]
          %v692 = vld [vmem:[#allocation3 + $0x28] sm:$0xff]
          %v693 = vld [vmem:[#allocation3 + $0x30] sm:$0xff]
          %v694 = vld [vmem:[#allocation3 + $0x38] sm:$0xff]
          %v695 = vld [vmem:[#allocation3 + $0x40] sm:$0xff]
          %v696 = vld [vmem:[#allocation3 + $0x48] sm:$0xff]
          %v697 = vld [vmem:[#allocation3 + $0x50] sm:$0xff]
          %v698 = vld [vmem:[#allocation3 + $0x58] sm:$0xff]
          %v699 = vld [vmem:[#allocation3 + $0x60] sm:$0xff]
          %v700 = vld [vmem:[#allocation3 + $0x68] sm:$0xff]
          %v701 = vld [vmem:[#allocation3 + $0x70] sm:$0xff]
          %v702 = vld [vmem:[#allocation3 + $0x78] sm:$0xff]
          %v703 = vld [vmem:[#allocation3 + $0x80] sm:$0xff]
          %v704 = vld [vmem:[#allocation3 + $0x88] sm:$0xff]
          %v705 = vld [vmem:[#allocation3 + $0x90] sm:$0xff]
          %v706 = vld [vmem:[#allocation3 + $0x98] sm:$0xff]
          %v707 = vld [vmem:[#allocation3 + $0xa0] sm:$0xff]
          %v708 = vld [vmem:[#allocation3 + $0xa8] sm:$0xff]
          %v709 = vld [vmem:[#allocation3 + $0xb0] sm:$0xff]
          %v710 = vld [vmem:[#allocation3 + $0xb8] sm:$0xff]
          %v711 = vld [vmem:[#allocation3 + $0xc0] sm:$0xff]
          %v712 = vld [vmem:[#allocation3 + $0xc8] sm:$0xff]
          %v713 = vld [vmem:[#allocation3 + $0xd0] sm:$0xff]
          %v714 = vld [vmem:[#allocation3 + $0xd8] sm:$0xff]
          %v715 = vld [vmem:[#allocation3 + $0xe0] sm:$0xff]
          %v716 = vld [vmem:[#allocation3 + $0xe8] sm:$0xff]
          %v717 = vld [vmem:[#allocation3 + $0xf0] sm:$0xff]
          %v718 = vld [vmem:[#allocation3 + $0xf8] sm:$0xff]
          %s719 = scalar_lea.vmem [#allocation9], %s686
          %v720 = vld [vmem:[%s719] sm:$0xff]
          %v721 = vld [vmem:[%s719 + $0x8] sm:$0xff]
          %v722 = vld [vmem:[%s719 + $0x10] sm:$0xff]
          %v723 = vld [vmem:[%s719 + $0x18] sm:$0xff]
          %v724 = vld [vmem:[%s719 + $0x20] sm:$0xff]
          %v725 = vld [vmem:[%s719 + $0x28] sm:$0xff]
          %v726 = vld [vmem:[%s719 + $0x30] sm:$0xff]
          %v727 = vld [vmem:[%s719 + $0x38] sm:$0xff]
          %v728 = vld [vmem:[%s719 + $0x40] sm:$0xff]
          %v729 = vld [vmem:[%s719 + $0x48] sm:$0xff]
          %v730 = vld [vmem:[%s719 + $0x50] sm:$0xff]
          %v731 = vld [vmem:[%s719 + $0x58] sm:$0xff]
          %v732 = vld [vmem:[%s719 + $0x60] sm:$0xff]
          %v733 = vld [vmem:[%s719 + $0x68] sm:$0xff]
          %v734 = vld [vmem:[%s719 + $0x70] sm:$0xff]
          %v735 = vld [vmem:[%s719 + $0x78] sm:$0xff]
          %736 = vmatpush.msra.mxu0 %v735
          %737 = vmatpush.msra.mxu0 %v734
          %738 = vmatpush.msra.mxu0 %v733
          %739 = vmatpush.msra.mxu0 %v732
          %740 = vmatpush.msra.mxu0 %v731
          %741 = vmatpush.msra.mxu0 %v730
          %742 = vmatpush.msra.mxu0 %v729
          %743 = vmatpush.msra.mxu0 %v728
          %744 = vmatpush.msra.mxu0 %v727
          %745 = vmatpush.msra.mxu0 %v726
          %746 = vmatpush.msra.mxu0 %v725
          %747 = vmatpush.msra.mxu0 %v724
          %748 = vmatpush.msra.mxu0 %v723
          %749 = vmatpush.msra.mxu0 %v722
          %750 = vmatpush.msra.mxu0 %v721
          %751 = vmatpush.msra.mxu0 %v720
          %752 = vmatmul.f32.gmra.mxu0 %v390
          %v753 = vpop.f32.mrf.mxu0
          %v754 = vadd.f32 0.0, %v753
          %755 = vmatmul.f32.gmra.mxu0 %v391
          %v756 = vpop.f32.mrf.mxu0
          %v757 = vadd.f32 0.0, %v756
          %758 = vmatmul.f32.gmra.mxu0 %v392
          %v759 = vpop.f32.mrf.mxu0
          %v760 = vadd.f32 0.0, %v759
          %761 = vmatmul.f32.gmra.mxu0 %v393
          %v762 = vpop.f32.mrf.mxu0
          %v763 = vadd.f32 0.0, %v762
          %764 = vmatmul.f32.gmra.mxu0 %v394
          %v765 = vpop.f32.mrf.mxu0
          %v766 = vadd.f32 0.0, %v765
          %767 = vmatmul.f32.gmra.mxu0 %v395
          %v768 = vpop.f32.mrf.mxu0
          %v769 = vadd.f32 0.0, %v768
          %770 = vmatmul.f32.gmra.mxu0 %v396
          %v771 = vpop.f32.mrf.mxu0
          %v772 = vadd.f32 0.0, %v771
          %773 = vmatmul.f32.gmra.mxu0 %v397
          %v774 = vpop.f32.mrf.mxu0
          %v775 = vadd.f32 0.0, %v774
          %776 = vmatmul.f32.gmra.mxu0 %v398
          %v777 = vpop.f32.mrf.mxu0
          %v778 = vadd.f32 0.0, %v777
          %779 = vmatmul.f32.gmra.mxu0 %v399
          %v780 = vpop.f32.mrf.mxu0
          %v781 = vadd.f32 0.0, %v780
          %782 = vmatmul.f32.gmra.mxu0 %v400
          %v783 = vpop.f32.mrf.mxu0
          %v784 = vadd.f32 0.0, %v783
          %785 = vmatmul.f32.gmra.mxu0 %v401
          %v786 = vpop.f32.mrf.mxu0
          %v787 = vadd.f32 0.0, %v786
          %788 = vmatmul.f32.gmra.mxu0 %v402
          %v789 = vpop.f32.mrf.mxu0
          %v790 = vadd.f32 0.0, %v789
          %791 = vmatmul.f32.gmra.mxu0 %v403
          %v792 = vpop.f32.mrf.mxu0
          %v793 = vadd.f32 0.0, %v792
          %794 = vmatmul.f32.gmra.mxu0 %v404
          %v795 = vpop.f32.mrf.mxu0
          %v796 = vadd.f32 0.0, %v795
          %797 = vmatmul.f32.gmra.mxu0 %v405
          %v798 = vpop.f32.mrf.mxu0
          %v799 = vadd.f32 0.0, %v798
          %800 = vmatmul.f32.gmra.mxu0 %v406
          %v801 = vpop.f32.mrf.mxu0
          %v802 = vadd.f32 0.0, %v801
          %803 = vmatmul.f32.gmra.mxu0 %v407
          %v804 = vpop.f32.mrf.mxu0
          %v805 = vadd.f32 0.0, %v804
          %806 = vmatmul.f32.gmra.mxu0 %v408
          %v807 = vpop.f32.mrf.mxu0
          %v808 = vadd.f32 0.0, %v807
          %809 = vmatmul.f32.gmra.mxu0 %v409
          %v810 = vpop.f32.mrf.mxu0
          %v811 = vadd.f32 0.0, %v810
          %812 = vmatmul.f32.gmra.mxu0 %v410
          %v813 = vpop.f32.mrf.mxu0
          %v814 = vadd.f32 0.0, %v813
          %815 = vmatmul.f32.gmra.mxu0 %v411
          %v816 = vpop.f32.mrf.mxu0
          %v817 = vadd.f32 0.0, %v816
          %818 = vmatmul.f32.gmra.mxu0 %v412
          %v819 = vpop.f32.mrf.mxu0
          %v820 = vadd.f32 0.0, %v819
          %821 = vmatmul.f32.gmra.mxu0 %v413
          %v822 = vpop.f32.mrf.mxu0
          %v823 = vadd.f32 0.0, %v822
          %824 = vmatmul.f32.gmra.mxu0 %v414
          %v825 = vpop.f32.mrf.mxu0
          %v826 = vadd.f32 0.0, %v825
          %827 = vmatmul.f32.gmra.mxu0 %v415
          %v828 = vpop.f32.mrf.mxu0
          %v829 = vadd.f32 0.0, %v828
          %830 = vmatmul.f32.gmra.mxu0 %v416
          %v831 = vpop.f32.mrf.mxu0
          %v832 = vadd.f32 0.0, %v831
          %833 = vmatmul.f32.gmra.mxu0 %v417
          %v834 = vpop.f32.mrf.mxu0
          %v835 = vadd.f32 0.0, %v834
          %836 = vmatmul.f32.gmra.mxu0 %v418
          %v837 = vpop.f32.mrf.mxu0
          %v838 = vadd.f32 0.0, %v837
          %839 = vmatmul.f32.gmra.mxu0 %v419
          %v840 = vpop.f32.mrf.mxu0
          %v841 = vadd.f32 0.0, %v840
          %842 = vmatmul.f32.gmra.mxu0 %v420
          %v843 = vpop.f32.mrf.mxu0
          %v844 = vadd.f32 0.0, %v843
          %845 = vmatmul.f32.gmra.mxu0 %v421
          %v846 = vpop.f32.mrf.mxu0
          %v847 = vadd.f32 0.0, %v846
          %848 = vdwg.mxu0
          %v849 = vadd.f32 %v687, %v754
          %v850 = vadd.f32 %v688, %v757
          %v851 = vadd.f32 %v689, %v760
          %v852 = vadd.f32 %v690, %v763
          %v853 = vadd.f32 %v691, %v766
          %v854 = vadd.f32 %v692, %v769
          %v855 = vadd.f32 %v693, %v772
          %v856 = vadd.f32 %v694, %v775
          %v857 = vadd.f32 %v695, %v778
          %v858 = vadd.f32 %v696, %v781
          %v859 = vadd.f32 %v697, %v784
          %v860 = vadd.f32 %v698, %v787
          %v861 = vadd.f32 %v699, %v790
          %v862 = vadd.f32 %v700, %v793
          %v863 = vadd.f32 %v701, %v796
          %v864 = vadd.f32 %v702, %v799
          %v865 = vadd.f32 %v703, %v802
          %v866 = vadd.f32 %v704, %v805
          %v867 = vadd.f32 %v705, %v808
          %v868 = vadd.f32 %v706, %v811
          %v869 = vadd.f32 %v707, %v814
          %v870 = vadd.f32 %v708, %v817
          %v871 = vadd.f32 %v709, %v820
          %v872 = vadd.f32 %v710, %v823
          %v873 = vadd.f32 %v711, %v826
          %v874 = vadd.f32 %v712, %v829
          %v875 = vadd.f32 %v713, %v832
          %v876 = vadd.f32 %v714, %v835
          %v877 = vadd.f32 %v715, %v838
          %v878 = vadd.f32 %v716, %v841
          %v879 = vadd.f32 %v717, %v844
          %v880 = vadd.f32 %v718, %v847
          %881 = vst [vmem:[#allocation3] sm:$0xff] %v849
          %882 = vst [vmem:[#allocation3 + $0x8] sm:$0xff] %v850
          %883 = vst [vmem:[#allocation3 + $0x10] sm:$0xff] %v851
          %884 = vst [vmem:[#allocation3 + $0x18] sm:$0xff] %v852
          %885 = vst [vmem:[#allocation3 + $0x20] sm:$0xff] %v853
          %886 = vst [vmem:[#allocation3 + $0x28] sm:$0xff] %v854
          %887 = vst [vmem:[#allocation3 + $0x30] sm:$0xff] %v855
          %888 = vst [vmem:[#allocation3 + $0x38] sm:$0xff] %v856
          %889 = vst [vmem:[#allocation3 + $0x40] sm:$0xff] %v857
          %890 = vst [vmem:[#allocation3 + $0x48] sm:$0xff] %v858
          %891 = vst [vmem:[#allocation3 + $0x50] sm:$0xff] %v859
          %892 = vst [vmem:[#allocation3 + $0x58] sm:$0xff] %v860
          %893 = vst [vmem:[#allocation3 + $0x60] sm:$0xff] %v861
          %894 = vst [vmem:[#allocation3 + $0x68] sm:$0xff] %v862
          %895 = vst [vmem:[#allocation3 + $0x70] sm:$0xff] %v863
          %896 = vst [vmem:[#allocation3 + $0x78] sm:$0xff] %v864
          %897 = vst [vmem:[#allocation3 + $0x80] sm:$0xff] %v865
          %898 = vst [vmem:[#allocation3 + $0x88] sm:$0xff] %v866
          %899 = vst [vmem:[#allocation3 + $0x90] sm:$0xff] %v867
          %900 = vst [vmem:[#allocation3 + $0x98] sm:$0xff] %v868
          %901 = vst [vmem:[#allocation3 + $0xa0] sm:$0xff] %v869
          %902 = vst [vmem:[#allocation3 + $0xa8] sm:$0xff] %v870
          %903 = vst [vmem:[#allocation3 + $0xb0] sm:$0xff] %v871
          %904 = vst [vmem:[#allocation3 + $0xb8] sm:$0xff] %v872
          %905 = vst [vmem:[#allocation3 + $0xc0] sm:$0xff] %v873
          %906 = vst [vmem:[#allocation3 + $0xc8] sm:$0xff] %v874
          %907 = vst [vmem:[#allocation3 + $0xd0] sm:$0xff] %v875
          %908 = vst [vmem:[#allocation3 + $0xd8] sm:$0xff] %v876
          %909 = vst [vmem:[#allocation3 + $0xe0] sm:$0xff] %v877
          %910 = vst [vmem:[#allocation3 + $0xe8] sm:$0xff] %v878
          %911 = vst [vmem:[#allocation3 + $0xf0] sm:$0xff] %v879
          %912 = vst [vmem:[#allocation3 + $0xf8] sm:$0xff] %v880
        $region64: #{tpu_custom_call.1} parent=39 // pred_fallthru
          _
        // Predicated region
        $region69: #{tpu_custom_call.1} parent=39 // pred_check
          %p913 = pneg %p354
        $region70: #{tpu_custom_call.1} parent=39 // pred_check_branch
          %915 = sbr.rel (%p913) target = $region72
        $region71: #{tpu_custom_call.1} parent=39 // pred_region
          %v916 = vld [vmem:[#allocation3] sm:$0xff]
          %v917 = vld [vmem:[#allocation3 + $0x8] sm:$0xff]
          %v918 = vld [vmem:[#allocation3 + $0x10] sm:$0xff]
          %v919 = vld [vmem:[#allocation3 + $0x18] sm:$0xff]
          %v920 = vld [vmem:[#allocation3 + $0x20] sm:$0xff]
          %v921 = vld [vmem:[#allocation3 + $0x28] sm:$0xff]
          %v922 = vld [vmem:[#allocation3 + $0x30] sm:$0xff]
          %v923 = vld [vmem:[#allocation3 + $0x38] sm:$0xff]
          %v924 = vld [vmem:[#allocation3 + $0x40] sm:$0xff]
          %v925 = vld [vmem:[#allocation3 + $0x48] sm:$0xff]
          %v926 = vld [vmem:[#allocation3 + $0x50] sm:$0xff]
          %v927 = vld [vmem:[#allocation3 + $0x58] sm:$0xff]
          %v928 = vld [vmem:[#allocation3 + $0x60] sm:$0xff]
          %v929 = vld [vmem:[#allocation3 + $0x68] sm:$0xff]
          %v930 = vld [vmem:[#allocation3 + $0x70] sm:$0xff]
          %v931 = vld [vmem:[#allocation3 + $0x78] sm:$0xff]
          %v932 = vld [vmem:[#allocation3 + $0x80] sm:$0xff]
          %v933 = vld [vmem:[#allocation3 + $0x88] sm:$0xff]
          %v934 = vld [vmem:[#allocation3 + $0x90] sm:$0xff]
          %v935 = vld [vmem:[#allocation3 + $0x98] sm:$0xff]
          %v936 = vld [vmem:[#allocation3 + $0xa0] sm:$0xff]
          %v937 = vld [vmem:[#allocation3 + $0xa8] sm:$0xff]
          %v938 = vld [vmem:[#allocation3 + $0xb0] sm:$0xff]
          %v939 = vld [vmem:[#allocation3 + $0xb8] sm:$0xff]
          %v940 = vld [vmem:[#allocation3 + $0xc0] sm:$0xff]
          %v941 = vld [vmem:[#allocation3 + $0xc8] sm:$0xff]
          %v942 = vld [vmem:[#allocation3 + $0xd0] sm:$0xff]
          %v943 = vld [vmem:[#allocation3 + $0xd8] sm:$0xff]
          %v944 = vld [vmem:[#allocation3 + $0xe0] sm:$0xff]
          %v945 = vld [vmem:[#allocation3 + $0xe8] sm:$0xff]
          %v946 = vld [vmem:[#allocation3 + $0xf0] sm:$0xff]
          %v947 = vld [vmem:[#allocation3 + $0xf8] sm:$0xff]
          %v948 = vmul.f32 %v916, 2.0
          %v949 = vmul.f32 %v917, 2.0
          %v950 = vmul.f32 %v918, 2.0
          %v951 = vmul.f32 %v919, 2.0
          %v952 = vmul.f32 %v920, 2.0
          %v953 = vmul.f32 %v921, 2.0
          %v954 = vmul.f32 %v922, 2.0
          %v955 = vmul.f32 %v923, 2.0
          %v956 = vmul.f32 %v924, 2.0
          %v957 = vmul.f32 %v925, 2.0
          %v958 = vmul.f32 %v926, 2.0
          %v959 = vmul.f32 %v927, 2.0
          %v960 = vmul.f32 %v928, 2.0
          %v961 = vmul.f32 %v929, 2.0
          %v962 = vmul.f32 %v930, 2.0
          %v963 = vmul.f32 %v931, 2.0
          %v964 = vmul.f32 %v932, 2.0
          %v965 = vmul.f32 %v933, 2.0
          %v966 = vmul.f32 %v934, 2.0
          %v967 = vmul.f32 %v935, 2.0
          %v968 = vmul.f32 %v936, 2.0
          %v969 = vmul.f32 %v937, 2.0
          %v970 = vmul.f32 %v938, 2.0
          %v971 = vmul.f32 %v939, 2.0
          %v972 = vmul.f32 %v940, 2.0
          %v973 = vmul.f32 %v941, 2.0
          %v974 = vmul.f32 %v942, 2.0
          %v975 = vmul.f32 %v943, 2.0
          %v976 = vmul.f32 %v944, 2.0
          %v977 = vmul.f32 %v945, 2.0
          %v978 = vmul.f32 %v946, 2.0
          %v979 = vmul.f32 %v947, 2.0
          %v980 = vld [vmem:[#allocation10] sm:$0xff]
          %v981 = vld [vmem:[#allocation10 + $0x8] sm:$0xff]
          %v982 = vld [vmem:[#allocation10 + $0x10] sm:$0xff]
          %v983 = vld [vmem:[#allocation10 + $0x18] sm:$0xff]
          %v984 = vld [vmem:[#allocation10 + $0x20] sm:$0xff]
          %v985 = vld [vmem:[#allocation10 + $0x28] sm:$0xff]
          %v986 = vld [vmem:[#allocation10 + $0x30] sm:$0xff]
          %v987 = vld [vmem:[#allocation10 + $0x38] sm:$0xff]
          %v988 = vld [vmem:[#allocation10 + $0x40] sm:$0xff]
          %v989 = vld [vmem:[#allocation10 + $0x48] sm:$0xff]
          %v990 = vld [vmem:[#allocation10 + $0x50] sm:$0xff]
          %v991 = vld [vmem:[#allocation10 + $0x58] sm:$0xff]
          %v992 = vld [vmem:[#allocation10 + $0x60] sm:$0xff]
          %v993 = vld [vmem:[#allocation10 + $0x68] sm:$0xff]
          %v994 = vld [vmem:[#allocation10 + $0x70] sm:$0xff]
          %v995 = vld [vmem:[#allocation10 + $0x78] sm:$0xff]
          %996 = vmatpush.msra.mxu0 %v995
          %997 = vmatpush.msra.mxu0 %v994
          %998 = vmatpush.msra.mxu0 %v993
          %999 = vmatpush.msra.mxu0 %v992
          %1000 = vmatpush.msra.mxu0 %v991
          %1001 = vmatpush.msra.mxu0 %v990
          %1002 = vmatpush.msra.mxu0 %v989
          %1003 = vmatpush.msra.mxu0 %v988
          %1004 = vmatpush.msra.mxu0 %v987
          %1005 = vmatpush.msra.mxu0 %v986
          %1006 = vmatpush.msra.mxu0 %v985
          %1007 = vmatpush.msra.mxu0 %v984
          %1008 = vmatpush.msra.mxu0 %v983
          %1009 = vmatpush.msra.mxu0 %v982
          %1010 = vmatpush.msra.mxu0 %v981
          %1011 = vmatpush.msra.mxu0 %v980
          %1012 = vmatmul.f32.gmra.mxu0 %v948
          %v1013 = vpop.f32.mrf.mxu0
          %v1014 = vadd.f32 0.0, %v1013
          %1015 = vmatmul.f32.gmra.mxu0 %v949
          %v1016 = vpop.f32.mrf.mxu0
          %v1017 = vadd.f32 0.0, %v1016
          %1018 = vmatmul.f32.gmra.mxu0 %v950
          %v1019 = vpop.f32.mrf.mxu0
          %v1020 = vadd.f32 0.0, %v1019
          %1021 = vmatmul.f32.gmra.mxu0 %v951
          %v1022 = vpop.f32.mrf.mxu0
          %v1023 = vadd.f32 0.0, %v1022
          %1024 = vmatmul.f32.gmra.mxu0 %v952
          %v1025 = vpop.f32.mrf.mxu0
          %v1026 = vadd.f32 0.0, %v1025
          %1027 = vmatmul.f32.gmra.mxu0 %v953
          %v1028 = vpop.f32.mrf.mxu0
          %v1029 = vadd.f32 0.0, %v1028
          %1030 = vmatmul.f32.gmra.mxu0 %v954
          %v1031 = vpop.f32.mrf.mxu0
          %v1032 = vadd.f32 0.0, %v1031
          %1033 = vmatmul.f32.gmra.mxu0 %v955
          %v1034 = vpop.f32.mrf.mxu0
          %v1035 = vadd.f32 0.0, %v1034
          %1036 = vmatmul.f32.gmra.mxu0 %v956
          %v1037 = vpop.f32.mrf.mxu0
          %v1038 = vadd.f32 0.0, %v1037
          %1039 = vmatmul.f32.gmra.mxu0 %v957
          %v1040 = vpop.f32.mrf.mxu0
          %v1041 = vadd.f32 0.0, %v1040
          %1042 = vmatmul.f32.gmra.mxu0 %v958
          %v1043 = vpop.f32.mrf.mxu0
          %v1044 = vadd.f32 0.0, %v1043
          %1045 = vmatmul.f32.gmra.mxu0 %v959
          %v1046 = vpop.f32.mrf.mxu0
          %v1047 = vadd.f32 0.0, %v1046
          %1048 = vmatmul.f32.gmra.mxu0 %v960
          %v1049 = vpop.f32.mrf.mxu0
          %v1050 = vadd.f32 0.0, %v1049
          %1051 = vmatmul.f32.gmra.mxu0 %v961
          %v1052 = vpop.f32.mrf.mxu0
          %v1053 = vadd.f32 0.0, %v1052
          %1054 = vmatmul.f32.gmra.mxu0 %v962
          %v1055 = vpop.f32.mrf.mxu0
          %v1056 = vadd.f32 0.0, %v1055
          %1057 = vmatmul.f32.gmra.mxu0 %v963
          %v1058 = vpop.f32.mrf.mxu0
          %v1059 = vadd.f32 0.0, %v1058
          %1060 = vmatmul.f32.gmra.mxu0 %v964
          %v1061 = vpop.f32.mrf.mxu0
          %v1062 = vadd.f32 0.0, %v1061
          %1063 = vmatmul.f32.gmra.mxu0 %v965
          %v1064 = vpop.f32.mrf.mxu0
          %v1065 = vadd.f32 0.0, %v1064
          %1066 = vmatmul.f32.gmra.mxu0 %v966
          %v1067 = vpop.f32.mrf.mxu0
          %v1068 = vadd.f32 0.0, %v1067
          %1069 = vmatmul.f32.gmra.mxu0 %v967
          %v1070 = vpop.f32.mrf.mxu0
          %v1071 = vadd.f32 0.0, %v1070
          %1072 = vmatmul.f32.gmra.mxu0 %v968
          %v1073 = vpop.f32.mrf.mxu0
          %v1074 = vadd.f32 0.0, %v1073
          %1075 = vmatmul.f32.gmra.mxu0 %v969
          %v1076 = vpop.f32.mrf.mxu0
          %v1077 = vadd.f32 0.0, %v1076
          %1078 = vmatmul.f32.gmra.mxu0 %v970
          %v1079 = vpop.f32.mrf.mxu0
          %v1080 = vadd.f32 0.0, %v1079
          %1081 = vmatmul.f32.gmra.mxu0 %v971
          %v1082 = vpop.f32.mrf.mxu0
          %v1083 = vadd.f32 0.0, %v1082
          %1084 = vmatmul.f32.gmra.mxu0 %v972
          %v1085 = vpop.f32.mrf.mxu0
          %v1086 = vadd.f32 0.0, %v1085
          %1087 = vmatmul.f32.gmra.mxu0 %v973
          %v1088 = vpop.f32.mrf.mxu0
          %v1089 = vadd.f32 0.0, %v1088
          %1090 = vmatmul.f32.gmra.mxu0 %v974
          %v1091 = vpop.f32.mrf.mxu0
          %v1092 = vadd.f32 0.0, %v1091
          %1093 = vmatmul.f32.gmra.mxu0 %v975
          %v1094 = vpop.f32.mrf.mxu0
          %v1095 = vadd.f32 0.0, %v1094
          %1096 = vmatmul.f32.gmra.mxu0 %v976
          %v1097 = vpop.f32.mrf.mxu0
          %v1098 = vadd.f32 0.0, %v1097
          %1099 = vmatmul.f32.gmra.mxu0 %v977
          %v1100 = vpop.f32.mrf.mxu0
          %v1101 = vadd.f32 0.0, %v1100
          %1102 = vmatmul.f32.gmra.mxu0 %v978
          %v1103 = vpop.f32.mrf.mxu0
          %v1104 = vadd.f32 0.0, %v1103
          %1105 = vmatmul.f32.gmra.mxu0 %v979
          %v1106 = vpop.f32.mrf.mxu0
          %v1107 = vadd.f32 0.0, %v1106
          %1108 = vdwg.mxu0
          %v1109 = vld [vmem:[#allocation2] sm:$0xff]
          %v1110 = vld [vmem:[#allocation2 + $0x8] sm:$0xff]
          %v1111 = vld [vmem:[#allocation2 + $0x10] sm:$0xff]
          %v1112 = vld [vmem:[#allocation2 + $0x18] sm:$0xff]
          %v1113 = vld [vmem:[#allocation2 + $0x20] sm:$0xff]
          %v1114 = vld [vmem:[#allocation2 + $0x28] sm:$0xff]
          %v1115 = vld [vmem:[#allocation2 + $0x30] sm:$0xff]
          %v1116 = vld [vmem:[#allocation2 + $0x38] sm:$0xff]
          %v1117 = vld [vmem:[#allocation2 + $0x40] sm:$0xff]
          %v1118 = vld [vmem:[#allocation2 + $0x48] sm:$0xff]
          %v1119 = vld [vmem:[#allocation2 + $0x50] sm:$0xff]
          %v1120 = vld [vmem:[#allocation2 + $0x58] sm:$0xff]
          %v1121 = vld [vmem:[#allocation2 + $0x60] sm:$0xff]
          %v1122 = vld [vmem:[#allocation2 + $0x68] sm:$0xff]
          %v1123 = vld [vmem:[#allocation2 + $0x70] sm:$0xff]
          %v1124 = vld [vmem:[#allocation2 + $0x78] sm:$0xff]
          %v1125 = vld [vmem:[#allocation2 + $0x80] sm:$0xff]
          %v1126 = vld [vmem:[#allocation2 + $0x88] sm:$0xff]
          %v1127 = vld [vmem:[#allocation2 + $0x90] sm:$0xff]
          %v1128 = vld [vmem:[#allocation2 + $0x98] sm:$0xff]
          %v1129 = vld [vmem:[#allocation2 + $0xa0] sm:$0xff]
          %v1130 = vld [vmem:[#allocation2 + $0xa8] sm:$0xff]
          %v1131 = vld [vmem:[#allocation2 + $0xb0] sm:$0xff]
          %v1132 = vld [vmem:[#allocation2 + $0xb8] sm:$0xff]
          %v1133 = vld [vmem:[#allocation2 + $0xc0] sm:$0xff]
          %v1134 = vld [vmem:[#allocation2 + $0xc8] sm:$0xff]
          %v1135 = vld [vmem:[#allocation2 + $0xd0] sm:$0xff]
          %v1136 = vld [vmem:[#allocation2 + $0xd8] sm:$0xff]
          %v1137 = vld [vmem:[#allocation2 + $0xe0] sm:$0xff]
          %v1138 = vld [vmem:[#allocation2 + $0xe8] sm:$0xff]
          %v1139 = vld [vmem:[#allocation2 + $0xf0] sm:$0xff]
          %v1140 = vld [vmem:[#allocation2 + $0xf8] sm:$0xff]
          %v1141 = vld [vmem:[%s352] sm:$0x1]
          %v1143 = vperm.slane %v1141, 0
          %v1145 = vadd.f32 %v1109, %v1143
          %v1146 = vadd.f32 %v1110, %v1143
          %v1147 = vadd.f32 %v1111, %v1143
          %v1148 = vadd.f32 %v1112, %v1143
          %v1149 = vadd.f32 %v1113, %v1143
          %v1150 = vadd.f32 %v1114, %v1143
          %v1151 = vadd.f32 %v1115, %v1143
          %v1152 = vadd.f32 %v1116, %v1143
          %v1153 = vadd.f32 %v1117, %v1143
          %v1154 = vadd.f32 %v1118, %v1143
          %v1155 = vadd.f32 %v1119, %v1143
          %v1156 = vadd.f32 %v1120, %v1143
          %v1157 = vadd.f32 %v1121, %v1143
          %v1158 = vadd.f32 %v1122, %v1143
          %v1159 = vadd.f32 %v1123, %v1143
          %v1160 = vadd.f32 %v1124, %v1143
          %v1161 = vadd.f32 %v1125, %v1143
          %v1162 = vadd.f32 %v1126, %v1143
          %v1163 = vadd.f32 %v1127, %v1143
          %v1164 = vadd.f32 %v1128, %v1143
          %v1165 = vadd.f32 %v1129, %v1143
          %v1166 = vadd.f32 %v1130, %v1143
          %v1167 = vadd.f32 %v1131, %v1143
          %v1168 = vadd.f32 %v1132, %v1143
          %v1169 = vadd.f32 %v1133, %v1143
          %v1170 = vadd.f32 %v1134, %v1143
          %v1171 = vadd.f32 %v1135, %v1143
          %v1172 = vadd.f32 %v1136, %v1143
          %v1173 = vadd.f32 %v1137, %v1143
          %v1174 = vadd.f32 %v1138, %v1143
          %v1175 = vadd.f32 %v1139, %v1143
          %v1176 = vadd.f32 %v1140, %v1143
          %v1177 = vadd.f32 %v1145, %v1014
          %v1178 = vadd.f32 %v1146, %v1017
          %v1179 = vadd.f32 %v1147, %v1020
          %v1180 = vadd.f32 %v1148, %v1023
          %v1181 = vadd.f32 %v1149, %v1026
          %v1182 = vadd.f32 %v1150, %v1029
          %v1183 = vadd.f32 %v1151, %v1032
          %v1184 = vadd.f32 %v1152, %v1035
          %v1185 = vadd.f32 %v1153, %v1038
          %v1186 = vadd.f32 %v1154, %v1041
          %v1187 = vadd.f32 %v1155, %v1044
          %v1188 = vadd.f32 %v1156, %v1047
          %v1189 = vadd.f32 %v1157, %v1050
          %v1190 = vadd.f32 %v1158, %v1053
          %v1191 = vadd.f32 %v1159, %v1056
          %v1192 = vadd.f32 %v1160, %v1059
          %v1193 = vadd.f32 %v1161, %v1062
          %v1194 = vadd.f32 %v1162, %v1065
          %v1195 = vadd.f32 %v1163, %v1068
          %v1196 = vadd.f32 %v1164, %v1071
          %v1197 = vadd.f32 %v1165, %v1074
          %v1198 = vadd.f32 %v1166, %v1077
          %v1199 = vadd.f32 %v1167, %v1080
          %v1200 = vadd.f32 %v1168, %v1083
          %v1201 = vadd.f32 %v1169, %v1086
          %v1202 = vadd.f32 %v1170, %v1089
          %v1203 = vadd.f32 %v1171, %v1092
          %v1204 = vadd.f32 %v1172, %v1095
          %v1205 = vadd.f32 %v1173, %v1098
          %v1206 = vadd.f32 %v1174, %v1101
          %v1207 = vadd.f32 %v1175, %v1104
          %v1208 = vadd.f32 %v1176, %v1107
          %1209 = vst [vmem:[%s347] sm:$0xff] %v1177
          %1210 = vst [vmem:[%s347 + $0x8] sm:$0xff] %v1178
          %1211 = vst [vmem:[%s347 + $0x10] sm:$0xff] %v1179
          %1212 = vst [vmem:[%s347 + $0x18] sm:$0xff] %v1180
          %1213 = vst [vmem:[%s347 + $0x20] sm:$0xff] %v1181
          %1214 = vst [vmem:[%s347 + $0x28] sm:$0xff] %v1182
          %1215 = vst [vmem:[%s347 + $0x30] sm:$0xff] %v1183
          %1216 = vst [vmem:[%s347 + $0x38] sm:$0xff] %v1184
          %1217 = vst [vmem:[%s347 + $0x40] sm:$0xff] %v1185
          %1218 = vst [vmem:[%s347 + $0x48] sm:$0xff] %v1186
          %1219 = vst [vmem:[%s347 + $0x50] sm:$0xff] %v1187
          %1220 = vst [vmem:[%s347 + $0x58] sm:$0xff] %v1188
          %1221 = vst [vmem:[%s347 + $0x60] sm:$0xff] %v1189
          %1222 = vst [vmem:[%s347 + $0x68] sm:$0xff] %v1190
          %1223 = vst [vmem:[%s347 + $0x70] sm:$0xff] %v1191
          %1224 = vst [vmem:[%s347 + $0x78] sm:$0xff] %v1192
          %1225 = vst [vmem:[%s347 + $0x80] sm:$0xff] %v1193
          %1226 = vst [vmem:[%s347 + $0x88] sm:$0xff] %v1194
          %1227 = vst [vmem:[%s347 + $0x90] sm:$0xff] %v1195
          %1228 = vst [vmem:[%s347 + $0x98] sm:$0xff] %v1196
          %1229 = vst [vmem:[%s347 + $0xa0] sm:$0xff] %v1197
          %1230 = vst [vmem:[%s347 + $0xa8] sm:$0xff] %v1198
          %1231 = vst [vmem:[%s347 + $0xb0] sm:$0xff] %v1199
          %1232 = vst [vmem:[%s347 + $0xb8] sm:$0xff] %v1200
          %1233 = vst [vmem:[%s347 + $0xc0] sm:$0xff] %v1201
          %1234 = vst [vmem:[%s347 + $0xc8] sm:$0xff] %v1202
          %1235 = vst [vmem:[%s347 + $0xd0] sm:$0xff] %v1203
          %1236 = vst [vmem:[%s347 + $0xd8] sm:$0xff] %v1204
          %1237 = vst [vmem:[%s347 + $0xe0] sm:$0xff] %v1205
          %1238 = vst [vmem:[%s347 + $0xe8] sm:$0xff] %v1206
          %1239 = vst [vmem:[%s347 + $0xf0] sm:$0xff] %v1207
          %1240 = vst [vmem:[%s347 + $0xf8] sm:$0xff] %v1208
        $region72: #{tpu_custom_call.1} parent=39 // pred_fallthru
          _
        %s1241 = sand.u32 %s182, 1
        %s1242 = scalar_lea.sflag [#allocation6], %s1241
        %s1243 = sand.u32 %s182, 1
        %s1244 = smul.addr %s1243, 256
        %s1245 = scalar_lea.vmem [#allocation12], %s1244
        // Predicated region
        $region73: #{tpu_custom_call.1} parent=39 // pred_check
          %p1246 = pneg %p192
        $region74: #{tpu_custom_call.1} parent=39 // pred_check_branch
          %1248 = sbr.rel (%p1246) target = $region76
        $region75: #{tpu_custom_call.1} parent=39 // pred_region
          %s1249 = smul.u32 32, %s29
          %1251 = vsyncadd %s1242, 0
          %s1252 = sadd.s32 %s30, %s1249
          %s1253 = smul.addr %s1252, 8
          %s1254 = scalar_lea.hbm %s5, %s1253
          %s1255 = sshll.u32 %s1245, 4
          %s1256 = int_to_ptr.vmem [resolvable:$true] %s1255
          %s1257 = sshll.u32 %s1254, 4
          %s1258 = int_to_ptr.hbm [resolvable:$true] %s1257
          %1263 = dma.vmem_to_hbm [thread:$0]  %s1256, 4096, %s1258, %s1242, 128, 128, 8
        $region76: #{tpu_custom_call.1} parent=39 // pred_fallthru
          _
      $region40: #{tpu_custom_call.1} parent=5 // pred_fallthru
        _
      %p1264 = scmp.le.s32.totalorder 2, %s19
      // Predicated region
      $region77: #{tpu_custom_call.1} parent=5 // pred_check
        %p1265 = pneg %p1264
      $region78: #{tpu_custom_call.1} parent=5 // pred_check_branch
        %1267 = sbr.rel (%p1265) target = $region80
      $region79: #{tpu_custom_call.1} parent=5 // pred_region
        %s1268 = ssub.s32 %s19, 2
        // Predicated region
        $region81: #{tpu_custom_call.1} parent=79 // pred_check
          %p1269 = pneg %p198
        $region82: #{tpu_custom_call.1} parent=79 // pred_check_branch
          %1271 = sbr.rel (%p1269) target = $region84
        $region83: #{tpu_custom_call.1} parent=79 // pred_region
          %s1272 = sand.u32 %s183, 1
          %s1273 = scalar_lea.sflag [#allocation6], %s1272
          %s1274 = sand.u32 %s183, 1
          %s1275 = smul.addr %s1274, 256
          %s1276 = scalar_lea.vmem [#allocation12], %s1275
          %1278 = dma.done %s1273, 4096
        $region84: #{tpu_custom_call.1} parent=79 // pred_fallthru
          _
      $region80: #{tpu_custom_call.1} parent=5 // pred_fallthru
        _
    $region6: #{tpu_custom_call.1} parent=1 // loop_footer
      %s23 = sadd.s32 1, %s19
    $region7: #{tpu_custom_call.1} parent=1 // loop_footer_branch
      %18 = sbr.rel target = $region3
    $region8: #{tpu_custom_call.1} parent=1 // loop_exit
      _
    %1279 = vsyncpa [#allocation5], 1
    %s1280 = scalar_lea.sflag [#allocation5], 1
    %1281 = vsyncpa %s1280, 1
    %1282 = vsyncpa [#allocation8], 1
    %1283 = vsyncpa [#allocation11], 1
    %1284 = vsyncpa [#allocation6], 1
    %s1285 = scalar_lea.sflag [#allocation6], 1
    %1286 = vsyncpa %s1285, 1

</llo_original>
